<compile_context>
chip_gen: v7x
topology: tpu7x:2x2x1
jax: 0.10.0
libtpu: 0.0.40
codegen_flags: <defaults>
</compile_context>

<pallas_src>
import functools

import jax
import jax.numpy as jnp
from jax.experimental import pallas as pl
from jax.experimental.pallas import tpu as pltpu

_SUBLANE = 8    # f32 sublane tile
_LANE = 128     # lane tile


def _round_up(x, m):
    return ((x + m - 1) // m) * m


# ----------------------------------------------------------------------------
# Fused sequence kernel: one grid step = one timestep, all layers
# ----------------------------------------------------------------------------
def encoder_lstm_kernel(x_ref, wih_ref, whh_ref, b_ref, h_ref, c_ref):
    """One timestep of a multi-layer LSTM; h/c live in the resident out blocks.

    x_ref:   (1, B, F)   embedded input for this timestep
    wih_ref: (L, F, 4F)  input->gate weights  (padded rows/cols are zero)
    whh_ref: (L, F, 4F)  hidden->gate weights (padded rows/cols are zero)
    b_ref:   (L, 1, 4F)  combined bias b_ih + b_hh (padded cols zero)
    h_ref:   (L, B, F)   hidden state (VMEM-resident accumulator output)
    c_ref:   (L, B, F)   cell state   (VMEM-resident accumulator output)
    Gate order i, f, g, o (PyTorch convention).
    """
    t = pl.program_id(0)

    @pl.when(t == 0)
    def _init():
        h_ref[...] = jnp.zeros_like(h_ref)
        c_ref[...] = jnp.zeros_like(c_ref)

    num_layers = h_ref.shape[0]
    fdim = h_ref.shape[2]

    layer_in = x_ref[0]                                        # (B, F)
    for l in range(num_layers):
        h = h_ref[l]
        c = c_ref[l]
        gates = jnp.dot(layer_in, wih_ref[l],
                        preferred_element_type=jnp.float32)
        gates = gates + jnp.dot(h, whh_ref[l],
                                preferred_element_type=jnp.float32)
        gates = gates + b_ref[l]                               # (1, 4F) bcast
        # 128-lane-aligned gate slices (F is a multiple of 128)
        i = jax.nn.sigmoid(gates[:, 0 * fdim:1 * fdim])
        f = jax.nn.sigmoid(gates[:, 1 * fdim:2 * fdim])
        g = jnp.tanh(gates[:, 2 * fdim:3 * fdim])
        o = jax.nn.sigmoid(gates[:, 3 * fdim:4 * fdim])
        c_new = f * c + i * g
        h_new = o * jnp.tanh(c_new)
        h_ref[l] = h_new
        c_ref[l] = c_new
        # TODO(synk): training-mode inter-layer dropout omitted (eval identity).
        layer_in = h_new


# ----------------------------------------------------------------------------
# Jitted wrapper (embedding gather + single fused pallas_call)
# ----------------------------------------------------------------------------
@functools.partial(jax.jit, static_argnames=("hidden_size",))
def encoder_forward(source, padded, *, hidden_size):
    """source: (seq_len, batch) int32 -> (h_n, c_n), each (L, batch, hidden)."""
    seq_len, batch = source.shape
    num_layers, fdim, four_f = padded["wih"].shape
    b_pad = _round_up(batch, _SUBLANE)

    emb = jnp.take(padded["emb"], source, axis=0)              # (S, B, F)
    emb = jnp.pad(emb, ((0, 0), (0, b_pad - batch), (0, 0)))   # (S, Bp, F)

    state_shape = jax.ShapeDtypeStruct((num_layers, b_pad, fdim), jnp.float32)
    h, c = pl.pallas_call(
        encoder_lstm_kernel,
        out_shape=(state_shape, state_shape),
        grid_spec=pltpu.PrefetchScalarGridSpec(
            num_scalar_prefetch=0,
            grid=(seq_len,),
            in_specs=[
                # embedded input: one timestep per grid step (pipelined)
                pl.BlockSpec((1, b_pad, fdim), lambda t: (t, 0, 0)),
                # weights/bias: same block every step -> resident in VMEM
                pl.BlockSpec((num_layers, fdim, four_f), lambda t: (0, 0, 0)),
                pl.BlockSpec((num_layers, fdim, four_f), lambda t: (0, 0, 0)),
                pl.BlockSpec((num_layers, 1, four_f), lambda t: (0, 0, 0)),
            ],
            out_specs=(
                # same block index for every t -> h/c stay resident (carried
                # state), flushed to HBM once at the end.
                pl.BlockSpec((num_layers, b_pad, fdim), lambda t: (0, 0, 0)),
                pl.BlockSpec((num_layers, b_pad, fdim), lambda t: (0, 0, 0)),
            ),
        ),
        compiler_params=pltpu.CompilerParams(
            dimension_semantics=("arbitrary",)),
    )(emb, padded["wih"], padded["whh"], padded["b"])
    return h[:, :batch, :hidden_size], c[:, :batch, :hidden_size]


# ----------------------------------------------------------------------------
# Parameter init (logical shapes) + one-time TPU-friendly padding
# ----------------------------------------------------------------------------
def init_params(key, vocab_size, embed_dim, hidden_size, num_layers):
    """Logical (unpadded) params, pre-transposed vs. torch:
       wih[l]: (in_dim, 4H), whh[l]: (H, 4H), b[l] = b_ih + b_hh: (4H,)."""
    ks = jax.random.split(key, 1 + 3 * num_layers)
    emb = jax.random.normal(ks[0], (vocab_size, embed_dim), jnp.float32)
    s = hidden_size ** -0.5
    wih, whh, b = [], [], []
    i = 1
    for l in range(num_layers):
        in_dim = embed_dim if l == 0 else hidden_size
        wih.append(jax.random.uniform(ks[i], (in_dim, 4 * hidden_size),
                                      jnp.float32, -s, s)); i += 1
        whh.append(jax.random.uniform(ks[i], (hidden_size, 4 * hidden_size),
                                      jnp.float32, -s, s)); i += 1
        b.append(jax.random.uniform(ks[i], (4 * hidden_size,),
                                    jnp.float32, -2 * s, 2 * s)); i += 1
    return {"emb": emb, "wih": wih, "whh": whh, "b": b}


def prepare_params(params):
    """Zero-pad once to TPU-friendly shapes.

    Common padded feature width F = round_up(max(E, H), 128).  Each gate block
    is placed at k*F so the kernel's i/f/g/o slices are 128-lane aligned.
    Zero padding keeps the math exact (padded hidden/cell entries stay 0).
    """
    emb = params["emb"]
    E = emb.shape[1]
    H = params["whh"][0].shape[0]
    F = _round_up(max(E, H), _LANE)

    def pad_gate_w(w):                      # (in_dim, 4H) -> (F, 4F)
        in_dim, four_h = w.shape
        h = four_h // 4
        w4 = w.reshape(in_dim, 4, h)
        w4 = jnp.pad(w4, ((0, F - in_dim), (0, 0), (0, F - h)))
        return w4.reshape(F, 4 * F)

    def pad_gate_b(bias):                   # (4H,) -> (1, 4F)
        h = bias.shape[0] // 4
        b4 = bias.reshape(4, h)
        b4 = jnp.pad(b4, ((0, 0), (0, F - h)))
        return b4.reshape(1, 4 * F)

    # TODO(synk): on v6e/v7x the padded weights/emb could be cast to bfloat16
    # (keeping f32 MXU accumulation) to halve weight traffic; kept f32 here for
    # exact parity at these toy sizes.
    return {
        "emb": jnp.pad(emb, ((0, 0), (0, F - E))),
        "wih": jnp.stack([pad_gate_w(w) for w in params["wih"]]),
        "whh": jnp.stack([pad_gate_w(w) for w in params["whh"]]),
        "b":   jnp.stack([pad_gate_b(bb) for bb in params["b"]]),
    }


# ----------------------------------------------------------------------------
# Pure-JAX reference (unpadded) for correctness check
# ----------------------------------------------------------------------------
def reference_encoder(source, params):
    emb = params["emb"][source]                        # (S, B, E)
    S, B, _ = emb.shape
    L = len(params["wih"])
    H = params["whh"][0].shape[0]
    hs = [jnp.zeros((B, H), jnp.float32) for _ in range(L)]
    cs = [jnp.zeros((B, H), jnp.float32) for _ in range(L)]
    for t in range(S):
        x = emb[t]
        for l in range(L):
            gates = x @ params["wih"][l] + hs[l] @ params["whh"][l] + params["b"][l]
            i = jax.nn.sigmoid(gates[:, 0 * H:1 * H])
            f = jax.nn.sigmoid(gates[:, 1 * H:2 * H])
            g = jnp.tanh(gates[:, 2 * H:3 * H])
            o = jax.nn.sigmoid(gates[:, 3 * H:4 * H])
            cs[l] = f * cs[l] + i * g
            hs[l] = o * jnp.tanh(cs[l])
            x = hs[l]
    return jnp.stack(hs, 0), jnp.stack(cs, 0)


if __name__ == "__main__":
    SEQ_LEN, BATCH = 8, 2
    VOCAB_SIZE = 20            # `sequenec_size` (num_embeddings) in the module
    EMBED_DIM, HIDDEN_SIZE, NUM_LAYERS = 16, 32, 2

    key = jax.random.PRNGKey(0)
    k_params, k_src = jax.random.split(key)

    params = init_params(k_params, VOCAB_SIZE, EMBED_DIM, HIDDEN_SIZE, NUM_LAYERS)
    padded = prepare_params(params)
    source = jax.random.randint(k_src, (SEQ_LEN, BATCH), 0, VOCAB_SIZE, jnp.int32)

    h_n, c_n = encoder_forward(source, padded, hidden_size=HIDDEN_SIZE)
    h_n, c_n = jax.block_until_ready((h_n, c_n))

    assert h_n.shape == (NUM_LAYERS, BATCH, HIDDEN_SIZE)
    assert c_n.shape == (NUM_LAYERS, BATCH, HIDDEN_SIZE)
    assert bool(jnp.all(jnp.isfinite(h_n))) and bool(jnp.all(jnp.isfinite(c_n)))

    h_ref, c_ref = reference_encoder(source, params)
    assert bool(jnp.allclose(h_n, h_ref, atol=1e-4, rtol=1e-4))
    assert bool(jnp.allclose(c_n, c_ref, atol=1e-4, rtol=1e-4))

    print("KERNEL_OK")
</pallas_src>

<mosaic_0001>
module attributes {stable_mosaic.version = 11 : i64} {
  func.func @encoder_lstm_kernel(%arg0: i32, %arg1: memref<1x8x128xf32, #tpu.memory_space<vmem>>, %arg2: memref<2x128x512xf32, #tpu.memory_space<vmem>>, %arg3: memref<2x128x512xf32, #tpu.memory_space<vmem>>, %arg4: memref<2x1x512xf32, #tpu.memory_space<vmem>>, %arg5: memref<2x8x128xf32, #tpu.memory_space<vmem>>, %arg6: memref<2x8x128xf32, #tpu.memory_space<vmem>>) attributes {dimension_semantics = [#tpu.dimension_semantics<arbitrary>], iteration_bounds = array<i64: 8>, scalar_prefetch = 0 : i64, scratch_operands = 0 : i64, tpu.core_type = #tpu.core_type<tc>, window_params = [{transform_indices = @transform_0, window_bounds = array<i64: 1, 8, 128>}, {pipeline_mode = #tpu.pipeline_mode<synchronous>, transform_indices = @transform_1, window_bounds = array<i64: 2, 128, 512>}, {pipeline_mode = #tpu.pipeline_mode<synchronous>, transform_indices = @transform_2, window_bounds = array<i64: 2, 128, 512>}, {pipeline_mode = #tpu.pipeline_mode<synchronous>, transform_indices = @transform_3, window_bounds = array<i64: 2, 1, 512>}, {pipeline_mode = #tpu.pipeline_mode<synchronous>, transform_indices = @transform_4, window_bounds = array<i64: 2, 8, 128>}, {pipeline_mode = #tpu.pipeline_mode<synchronous>, transform_indices = @transform_5, window_bounds = array<i64: 2, 8, 128>}]} {
    %c0_i32 = arith.constant 0 : i32
    %0 = arith.cmpi eq, %arg0, %c0_i32 : i32
    %1 = arith.extui %0 : i1 to i32
    %c0_i32_0 = arith.constant 0 : i32
    %2 = arith.cmpi ne, %1, %c0_i32_0 : i32
    scf.if %2 {
      %cst_53 = arith.constant 0.000000e+00 : f32
      %97 = vector.broadcast %cst_53 : f32 to vector<2x8x128xf32>
      %c0_54 = arith.constant 0 : index
      %c0_55 = arith.constant 0 : index
      %c0_56 = arith.constant 0 : index
      %98 = vector.load %arg5[%c0_54, %c0_55, %c0_56] : memref<2x8x128xf32, #tpu.memory_space<vmem>>, vector<2x8x128xf32>
      tpu.vector_store %arg5[%c0_54, %c0_55, %c0_56], %97 {strides = array<i32>} : memref<2x8x128xf32, #tpu.memory_space<vmem>>, vector<2x8x128xf32>,
      %cst_57 = arith.constant 0.000000e+00 : f32
      %99 = vector.broadcast %cst_57 : f32 to vector<2x8x128xf32>
      %c0_58 = arith.constant 0 : index
      %c0_59 = arith.constant 0 : index
      %c0_60 = arith.constant 0 : index
      %100 = vector.load %arg6[%c0_58, %c0_59, %c0_60] : memref<2x8x128xf32, #tpu.memory_space<vmem>>, vector<2x8x128xf32>
      tpu.vector_store %arg6[%c0_58, %c0_59, %c0_60], %99 {strides = array<i32>} : memref<2x8x128xf32, #tpu.memory_space<vmem>>, vector<2x8x128xf32>,
    } else {
    }
    %c0 = arith.constant 0 : index
    %c0_1 = arith.constant 0 : index
    %c0_2 = arith.constant 0 : index
    %3 = vector.load %arg1[%c0, %c0_1, %c0_2] : memref<1x8x128xf32, #tpu.memory_space<vmem>>, vector<1x8x128xf32>
    %4 = vector.shape_cast %3 : vector<1x8x128xf32> to vector<8x128xf32>
    %c0_3 = arith.constant 0 : index
    %c0_4 = arith.constant 0 : index
    %c0_5 = arith.constant 0 : index
    %5 = vector.load %arg5[%c0_3, %c0_4, %c0_5] : memref<2x8x128xf32, #tpu.memory_space<vmem>>, vector<1x8x128xf32>
    %6 = vector.shape_cast %5 : vector<1x8x128xf32> to vector<8x128xf32>
    %c0_6 = arith.constant 0 : index
    %c0_7 = arith.constant 0 : index
    %c0_8 = arith.constant 0 : index
    %7 = vector.load %arg6[%c0_6, %c0_7, %c0_8] : memref<2x8x128xf32, #tpu.memory_space<vmem>>, vector<1x8x128xf32>
    %8 = vector.shape_cast %7 : vector<1x8x128xf32> to vector<8x128xf32>
    %c0_9 = arith.constant 0 : index
    %c0_10 = arith.constant 0 : index
    %c0_11 = arith.constant 0 : index
    %9 = vector.load %arg2[%c0_9, %c0_10, %c0_11] : memref<2x128x512xf32, #tpu.memory_space<vmem>>, vector<1x128x512xf32>
    %10 = vector.shape_cast %9 : vector<1x128x512xf32> to vector<128x512xf32>
    %cst = arith.constant dense<0.000000e+00> : vector<8x512xf32>
    %11 = tpu.matmul %4, %10, %cst {dimension_numbers = #tpu.dot_dimension_numbers<[1], [0], [0], [1], [0, 0, 1, 1], [], []>} : vector<8x128xf32>, vector<128x512xf32>, vector<8x512xf32> -> vector<8x512xf32>
    %c0_12 = arith.constant 0 : index
    %c0_13 = arith.constant 0 : index
    %c0_14 = arith.constant 0 : index
    %12 = vector.load %arg3[%c0_12, %c0_13, %c0_14] : memref<2x128x512xf32, #tpu.memory_space<vmem>>, vector<1x128x512xf32>
    %13 = vector.shape_cast %12 : vector<1x128x512xf32> to vector<128x512xf32>
    %cst_15 = arith.constant dense<0.000000e+00> : vector<8x512xf32>
    %14 = tpu.matmul %6, %13, %cst_15 {dimension_numbers = #tpu.dot_dimension_numbers<[1], [0], [0], [1], [0, 0, 1, 1], [], []>} : vector<8x128xf32>, vector<128x512xf32>, vector<8x512xf32> -> vector<8x512xf32>
    %15 = arith.addf %11, %14 : vector<8x512xf32>
    %c0_16 = arith.constant 0 : index
    %c0_17 = arith.constant 0 : index
    %c0_18 = arith.constant 0 : index
    %16 = vector.load %arg4[%c0_16, %c0_17, %c0_18] : memref<2x1x512xf32, #tpu.memory_space<vmem>>, vector<1x1x512xf32>
    %17 = vector.shape_cast %16 : vector<1x1x512xf32> to vector<1x512xf32>
    %18 = vector.broadcast %17 : vector<1x512xf32> to vector<8x512xf32>
    %19 = arith.addf %15, %18 : vector<8x512xf32>
    %20 = vector.extract_strided_slice %19 {offsets = [0, 0], sizes = [8, 128], strides = [1, 1]} : vector<8x512xf32> to vector<8x128xf32>
    %21 = arith.negf %20 : vector<8x128xf32>
    %22 = math.exp %21 : vector<8x128xf32>
    %cst_19 = arith.constant 1.000000e+00 : f32
    %23 = vector.broadcast %cst_19 : f32 to vector<8x128xf32>
    %24 = arith.addf %23, %22 : vector<8x128xf32>
    %25 = arith.divf %23, %24 : vector<8x128xf32>
    %26 = vector.extract_strided_slice %19 {offsets = [0, 128], sizes = [8, 128], strides = [1, 1]} : vector<8x512xf32> to vector<8x128xf32>
    %27 = arith.negf %26 : vector<8x128xf32>
    %28 = math.exp %27 : vector<8x128xf32>
    %cst_20 = arith.constant 1.000000e+00 : f32
    %29 = vector.broadcast %cst_20 : f32 to vector<8x128xf32>
    %30 = arith.addf %29, %28 : vector<8x128xf32>
    %31 = arith.divf %29, %30 : vector<8x128xf32>
    %32 = vector.extract_strided_slice %19 {offsets = [0, 256], sizes = [8, 128], strides = [1, 1]} : vector<8x512xf32> to vector<8x128xf32>
    %33 = math.tanh %32 : vector<8x128xf32>
    %34 = vector.extract_strided_slice %19 {offsets = [0, 384], sizes = [8, 128], strides = [1, 1]} : vector<8x512xf32> to vector<8x128xf32>
    %35 = arith.negf %34 : vector<8x128xf32>
    %36 = math.exp %35 : vector<8x128xf32>
    %cst_21 = arith.constant 1.000000e+00 : f32
    %37 = vector.broadcast %cst_21 : f32 to vector<8x128xf32>
    %38 = arith.addf %37, %36 : vector<8x128xf32>
    %39 = arith.divf %37, %38 : vector<8x128xf32>
    %40 = arith.mulf %31, %8 : vector<8x128xf32>
    %41 = arith.mulf %25, %33 : vector<8x128xf32>
    %42 = arith.addf %40, %41 : vector<8x128xf32>
    %43 = math.tanh %42 : vector<8x128xf32>
    %44 = arith.mulf %39, %43 : vector<8x128xf32>
    %c0_22 = arith.constant 0 : index
    %c0_23 = arith.constant 0 : index
    %c0_24 = arith.constant 0 : index
    %45 = vector.load %arg5[%c0_22, %c0_23, %c0_24] : memref<2x8x128xf32, #tpu.memory_space<vmem>>, vector<1x8x128xf32>
    %46 = vector.shape_cast %45 : vector<1x8x128xf32> to vector<8x128xf32>
    %47 = vector.shape_cast %44 : vector<8x128xf32> to vector<1x8x128xf32>
    tpu.vector_store %arg5[%c0_22, %c0_23, %c0_24], %47 {strides = array<i32>} : memref<2x8x128xf32, #tpu.memory_space<vmem>>, vector<1x8x128xf32>,
    %c0_25 = arith.constant 0 : index
    %c0_26 = arith.constant 0 : index
    %c0_27 = arith.constant 0 : index
    %48 = vector.load %arg6[%c0_25, %c0_26, %c0_27] : memref<2x8x128xf32, #tpu.memory_space<vmem>>, vector<1x8x128xf32>
    %49 = vector.shape_cast %48 : vector<1x8x128xf32> to vector<8x128xf32>
    %50 = vector.shape_cast %42 : vector<8x128xf32> to vector<1x8x128xf32>
    tpu.vector_store %arg6[%c0_25, %c0_26, %c0_27], %50 {strides = array<i32>} : memref<2x8x128xf32, #tpu.memory_space<vmem>>, vector<1x8x128xf32>,
    %c1 = arith.constant 1 : index
    %c0_28 = arith.constant 0 : index
    %c0_29 = arith.constant 0 : index
    %51 = vector.load %arg5[%c1, %c0_28, %c0_29] : memref<2x8x128xf32, #tpu.memory_space<vmem>>, vector<1x8x128xf32>
    %52 = vector.shape_cast %51 : vector<1x8x128xf32> to vector<8x128xf32>
    %c1_30 = arith.constant 1 : index
    %c0_31 = arith.constant 0 : index
    %c0_32 = arith.constant 0 : index
    %53 = vector.load %arg6[%c1_30, %c0_31, %c0_32] : memref<2x8x128xf32, #tpu.memory_space<vmem>>, vector<1x8x128xf32>
    %54 = vector.shape_cast %53 : vector<1x8x128xf32> to vector<8x128xf32>
    %c1_33 = arith.constant 1 : index
    %c0_34 = arith.constant 0 : index
    %c0_35 = arith.constant 0 : index
    %55 = vector.load %arg2[%c1_33, %c0_34, %c0_35] : memref<2x128x512xf32, #tpu.memory_space<vmem>>, vector<1x128x512xf32>
    %56 = vector.shape_cast %55 : vector<1x128x512xf32> to vector<128x512xf32>
    %cst_36 = arith.constant dense<0.000000e+00> : vector<8x512xf32>
    %57 = tpu.matmul %44, %56, %cst_36 {dimension_numbers = #tpu.dot_dimension_numbers<[1], [0], [0], [1], [0, 0, 1, 1], [], []>} : vector<8x128xf32>, vector<128x512xf32>, vector<8x512xf32> -> vector<8x512xf32>
    %c1_37 = arith.constant 1 : index
    %c0_38 = arith.constant 0 : index
    %c0_39 = arith.constant 0 : index
    %58 = vector.load %arg3[%c1_37, %c0_38, %c0_39] : memref<2x128x512xf32, #tpu.memory_space<vmem>>, vector<1x128x512xf32>
    %59 = vector.shape_cast %58 : vector<1x128x512xf32> to vector<128x512xf32>
    %cst_40 = arith.constant dense<0.000000e+00> : vector<8x512xf32>
    %60 = tpu.matmul %52, %59, %cst_40 {dimension_numbers = #tpu.dot_dimension_numbers<[1], [0], [0], [1], [0, 0, 1, 1], [], []>} : vector<8x128xf32>, vector<128x512xf32>, vector<8x512xf32> -> vector<8x512xf32>
    %61 = arith.addf %57, %60 : vector<8x512xf32>
    %c1_41 = arith.constant 1 : index
    %c0_42 = arith.constant 0 : index
    %c0_43 = arith.constant 0 : index
    %62 = vector.load %arg4[%c1_41, %c0_42, %c0_43] : memref<2x1x512xf32, #tpu.memory_space<vmem>>, vector<1x1x512xf32>
    %63 = vector.shape_cast %62 : vector<1x1x512xf32> to vector<1x512xf32>
    %64 = vector.broadcast %63 : vector<1x512xf32> to vector<8x512xf32>
    %65 = arith.addf %61, %64 : vector<8x512xf32>
    %66 = vector.extract_strided_slice %65 {offsets = [0, 0], sizes = [8, 128], strides = [1, 1]} : vector<8x512xf32> to vector<8x128xf32>
    %67 = arith.negf %66 : vector<8x128xf32>
    %68 = math.exp %67 : vector<8x128xf32>
    %cst_44 = arith.constant 1.000000e+00 : f32
    %69 = vector.broadcast %cst_44 : f32 to vector<8x128xf32>
    %70 = arith.addf %69, %68 : vector<8x128xf32>
    %71 = arith.divf %69, %70 : vector<8x128xf32>
    %72 = vector.extract_strided_slice %65 {offsets = [0, 128], sizes = [8, 128], strides = [1, 1]} : vector<8x512xf32> to vector<8x128xf32>
    %73 = arith.negf %72 : vector<8x128xf32>
    %74 = math.exp %73 : vector<8x128xf32>
    %cst_45 = arith.constant 1.000000e+00 : f32
    %75 = vector.broadcast %cst_45 : f32 to vector<8x128xf32>
    %76 = arith.addf %75, %74 : vector<8x128xf32>
    %77 = arith.divf %75, %76 : vector<8x128xf32>
    %78 = vector.extract_strided_slice %65 {offsets = [0, 256], sizes = [8, 128], strides = [1, 1]} : vector<8x512xf32> to vector<8x128xf32>
    %79 = math.tanh %78 : vector<8x128xf32>
    %80 = vector.extract_strided_slice %65 {offsets = [0, 384], sizes = [8, 128], strides = [1, 1]} : vector<8x512xf32> to vector<8x128xf32>
    %81 = arith.negf %80 : vector<8x128xf32>
    %82 = math.exp %81 : vector<8x128xf32>
    %cst_46 = arith.constant 1.000000e+00 : f32
    %83 = vector.broadcast %cst_46 : f32 to vector<8x128xf32>
    %84 = arith.addf %83, %82 : vector<8x128xf32>
    %85 = arith.divf %83, %84 : vector<8x128xf32>
    %86 = arith.mulf %77, %54 : vector<8x128xf32>
    %87 = arith.mulf %71, %79 : vector<8x128xf32>
    %88 = arith.addf %86, %87 : vector<8x128xf32>
    %89 = math.tanh %88 : vector<8x128xf32>
    %90 = arith.mulf %85, %89 : vector<8x128xf32>
    %c1_47 = arith.constant 1 : index
    %c0_48 = arith.constant 0 : index
    %c0_49 = arith.constant 0 : index
    %91 = vector.load %arg5[%c1_47, %c0_48, %c0_49] : memref<2x8x128xf32, #tpu.memory_space<vmem>>, vector<1x8x128xf32>
    %92 = vector.shape_cast %91 : vector<1x8x128xf32> to vector<8x128xf32>
    %93 = vector.shape_cast %90 : vector<8x128xf32> to vector<1x8x128xf32>
    tpu.vector_store %arg5[%c1_47, %c0_48, %c0_49], %93 {strides = array<i32>} : memref<2x8x128xf32, #tpu.memory_space<vmem>>, vector<1x8x128xf32>,
    %c1_50 = arith.constant 1 : index
    %c0_51 = arith.constant 0 : index
    %c0_52 = arith.constant 0 : index
    %94 = vector.load %arg6[%c1_50, %c0_51, %c0_52] : memref<2x8x128xf32, #tpu.memory_space<vmem>>, vector<1x8x128xf32>
    %95 = vector.shape_cast %94 : vector<1x8x128xf32> to vector<8x128xf32>
    %96 = vector.shape_cast %88 : vector<8x128xf32> to vector<1x8x128xf32>
    tpu.vector_store %arg6[%c1_50, %c0_51, %c0_52], %96 {strides = array<i32>} : memref<2x8x128xf32, #tpu.memory_space<vmem>>, vector<1x8x128xf32>,
    return
  }
  func.func @transform_0(%arg0: i32) -> (i32, i32, i32) {
    %c0_i32 = arith.constant 0 : i32
    %c0_i32_0 = arith.constant 0 : i32
    %c0_i32_1 = arith.constant 0 : i32
    return %arg0, %c0_i32, %c0_i32_0 : i32, i32, i32
  }
  func.func @transform_1(%arg0: i32) -> (i32, i32, i32) {
    %c0_i32 = arith.constant 0 : i32
    %c0_i32_0 = arith.constant 0 : i32
    %c0_i32_1 = arith.constant 0 : i32
    %c0_i32_2 = arith.constant 0 : i32
    return %c0_i32, %c0_i32_0, %c0_i32_1 : i32, i32, i32
  }
  func.func @transform_2(%arg0: i32) -> (i32, i32, i32) {
    %c0_i32 = arith.constant 0 : i32
    %c0_i32_0 = arith.constant 0 : i32
    %c0_i32_1 = arith.constant 0 : i32
    %c0_i32_2 = arith.constant 0 : i32
    return %c0_i32, %c0_i32_0, %c0_i32_1 : i32, i32, i32
  }
  func.func @transform_3(%arg0: i32) -> (i32, i32, i32) {
    %c0_i32 = arith.constant 0 : i32
    %c0_i32_0 = arith.constant 0 : i32
    %c0_i32_1 = arith.constant 0 : i32
    %c0_i32_2 = arith.constant 0 : i32
    return %c0_i32, %c0_i32_0, %c0_i32_1 : i32, i32, i32
  }
  func.func @transform_4(%arg0: i32) -> (i32, i32, i32) {
    %c0_i32 = arith.constant 0 : i32
    %c0_i32_0 = arith.constant 0 : i32
    %c0_i32_1 = arith.constant 0 : i32
    %c0_i32_2 = arith.constant 0 : i32
    return %c0_i32, %c0_i32_0, %c0_i32_1 : i32, i32, i32
  }
  func.func @transform_5(%arg0: i32) -> (i32, i32, i32) {
    %c0_i32 = arith.constant 0 : i32
    %c0_i32_0 = arith.constant 0 : i32
    %c0_i32_1 = arith.constant 0 : i32
    %c0_i32_2 = arith.constant 0 : i32
    return %c0_i32, %c0_i32_0, %c0_i32_1 : i32, i32, i32
  }
}

</mosaic_0001>

<llo_original>
// kernel: encoder_forward.1
$region0: #{encoder_forward.1}
  #allocation0 [shape = 'u32[]', space=smem, size = 0x4, offset = 0x4, fixed_abs, tag = 'smem constant byte address 0x4 - core index']
  #allocation1 [shape = 'u32[144,128]{1,0:T(1,128)}', space=vmem, size = 0x12000, scoped, tag = 'internal scratch']
  %s0 = inlined_call_operand.vmem [shape: f32[8,8,128], index: 0, kind: input, shape index: {}]
  %s1 = inlined_call_operand.hbm [shape: f32[2,128,512], index: 1, kind: input, shape index: {}]
  %s2 = inlined_call_operand.hbm [shape: f32[2,128,512], index: 2, kind: input, shape index: {}]
  %s3 = inlined_call_operand.vmem [shape: f32[2,1,512], index: 3, kind: input, shape index: {}]
  %s4 = inlined_call_operand.vmem [shape: f32[2,8,128], index: 4, kind: output, shape index: {0}]
  %s5 = inlined_call_operand.vmem [shape: f32[2,8,128], index: 5, kind: output, shape index: {1}]
  %6 = xla_tuple %s4, %s5
  %s7 = sld [smem:[#allocation0]]
  $region69: #{encoder_forward.1} parent=0
    _
  %s9 = ssub.s32 1, %s7
  %s10 = scalar_select 0, %s9, %s7
  $region1: #{encoder_forward.1} parent=0
    #allocation2 [shape = 'u8[524288]{0}', space=vmem, size = 0x80000, scoped, tag = 'input window, operand 1, single buffered']
    #allocation3 [shape = 's32[2]{0}', space=sflag, size = 0x8, scoped, tag = 'scoped memory for encoder_forward.1']
    #allocation4 [shape = 'u8[524288]{0}', space=vmem, size = 0x80000, scoped, tag = 'input window, operand 2, single buffered']
    #allocation5 [shape = 's32[1]{0}', space=sflag, size = 0x4, scoped, tag = 'scoped memory for encoder_forward.1']
    %11 = vsyncpa [#allocation3], 0
    %12 = vsyncpa [#allocation5], 0
    loop: start=0, step=1, limit=10
    $region2: #{encoder_forward.1} parent=1 // loop_pre_header
      _
    $region3: #{encoder_forward.1} parent=1 // loop_header
      %s14 = sphi 0, %s18
      %p15 = scmp.ge.s32.totalorder %s14, 10
      %s24 = sphi 0, %s26
      %s27 = sphi 0, %s24
      %s28 = sphi 0, %s27
      %s44 = sphi 0, %s28
      %s48 = sphi 0, %s48
      %s50 = sphi 0, %s48
      %s51 = sphi 0, %s50
      %s65 = sphi 0, %s51
      %s69 = sphi 0, %s69
      %s71 = sphi 0, %s69
      %s72 = sphi 0, %s71
      %s86 = sphi 0, %s72
      %s90 = sphi 0, %s90
      %s92 = sphi 0, %s90
      %s93 = sphi 0, %s92
      %s107 = sphi 0, %s93
      %s111 = sphi 0, %s111
      %s113 = sphi 0, %s111
      %s114 = sphi 0, %s113
      %s128 = sphi 0, %s114
      %s132 = sphi 0, %s132
      %s134 = sphi 0, %s132
      %s135 = sphi 0, %s134
      %s149 = sphi 0, %s135
    $region4: #{encoder_forward.1} parent=1 // loop_header_branch
      %17 = sbr.rel (%p15) target = $region8
    $region5: #{encoder_forward.1} parent=1 // loop_body
      %s19 = ssub.s32 %s14, 1
      %s20 = ssub.s32 %s14, 2
      %s21 = sadd.s32 %s14, 1
      %s22 = ssub.s32 %s14, %s21
      %p23 = scmp.eq.s32.totalorder %s22, 0
      %s25 = sadd.s32 %s24, 1
      %s26 = scalar_select %p23, %s24, %s25
      %p29 = pneg %p23
      %p30 = scmp.eq.s32.totalorder %s14, 7
      %p31 = por %p29, %p30
      %p32 = scmp.ne.s32.totalorder %s24, %s27
      %p33 = scmp.eq.s32.totalorder %s14, 0
      %p34 = por %p32, %p33
      %p35 = scmp.ne.s32.totalorder %s24, %s27
      %p36 = scmp.eq.s32.totalorder %s19, 7
      %p37 = por %p35, %p36
      %p38 = scmp.ne.s32.totalorder %s27, %s28
      %p39 = scmp.eq.s32.totalorder %s19, 0
      %p40 = por %p38, %p39
      %p41 = scmp.ne.s32.totalorder %s27, %s28
      %p42 = scmp.eq.s32.totalorder %s20, 7
      %p43 = por %p41, %p42
      %p45 = scmp.ne.s32.totalorder %s28, %s44
      %p46 = scmp.eq.s32.totalorder %s20, 0
      %p47 = por %p45, %p46
      %s49 = sadd.s32 %s48, 1
      %p52 = scmp.eq.s32.totalorder %s14, 7
      %p53 = scmp.ne.s32.totalorder %s48, %s50
      %p54 = scmp.eq.s32.totalorder %s14, 0
      %p55 = por %p53, %p54
      %p56 = scmp.ne.s32.totalorder %s48, %s50
      %p57 = scmp.eq.s32.totalorder %s19, 7
      %p58 = por %p56, %p57
      %p59 = scmp.ne.s32.totalorder %s50, %s51
      %p60 = scmp.eq.s32.totalorder %s19, 0
      %p61 = por %p59, %p60
      %p62 = scmp.ne.s32.totalorder %s50, %s51
      %p63 = scmp.eq.s32.totalorder %s20, 7
      %p64 = por %p62, %p63
      %p66 = scmp.ne.s32.totalorder %s51, %s65
      %p67 = scmp.eq.s32.totalorder %s20, 0
      %p68 = por %p66, %p67
      %s70 = sadd.s32 %s69, 1
      %p73 = scmp.eq.s32.totalorder %s14, 7
      %p74 = scmp.ne.s32.totalorder %s69, %s71
      %p75 = scmp.eq.s32.totalorder %s14, 0
      %p76 = por %p74, %p75
      %p77 = scmp.ne.s32.totalorder %s69, %s71
      %p78 = scmp.eq.s32.totalorder %s19, 7
      %p79 = por %p77, %p78
      %p80 = scmp.ne.s32.totalorder %s71, %s72
      %p81 = scmp.eq.s32.totalorder %s19, 0
      %p82 = por %p80, %p81
      %p83 = scmp.ne.s32.totalorder %s71, %s72
      %p84 = scmp.eq.s32.totalorder %s20, 7
      %p85 = por %p83, %p84
      %p87 = scmp.ne.s32.totalorder %s72, %s86
      %p88 = scmp.eq.s32.totalorder %s20, 0
      %p89 = por %p87, %p88
      %s91 = sadd.s32 %s90, 1
      %p94 = scmp.eq.s32.totalorder %s14, 7
      %p95 = scmp.ne.s32.totalorder %s90, %s92
      %p96 = scmp.eq.s32.totalorder %s14, 0
      %p97 = por %p95, %p96
      %p98 = scmp.ne.s32.totalorder %s90, %s92
      %p99 = scmp.eq.s32.totalorder %s19, 7
      %p100 = por %p98, %p99
      %p101 = scmp.ne.s32.totalorder %s92, %s93
      %p102 = scmp.eq.s32.totalorder %s19, 0
      %p103 = por %p101, %p102
      %p104 = scmp.ne.s32.totalorder %s92, %s93
      %p105 = scmp.eq.s32.totalorder %s20, 7
      %p106 = por %p104, %p105
      %p108 = scmp.ne.s32.totalorder %s93, %s107
      %p109 = scmp.eq.s32.totalorder %s20, 0
      %p110 = por %p108, %p109
      %s112 = sadd.s32 %s111, 1
      %p115 = scmp.eq.s32.totalorder %s14, 7
      %p116 = scmp.ne.s32.totalorder %s111, %s113
      %p117 = scmp.eq.s32.totalorder %s14, 0
      %p118 = por %p116, %p117
      %p119 = scmp.ne.s32.totalorder %s111, %s113
      %p120 = scmp.eq.s32.totalorder %s19, 7
      %p121 = por %p119, %p120
      %p122 = scmp.ne.s32.totalorder %s113, %s114
      %p123 = scmp.eq.s32.totalorder %s19, 0
      %p124 = por %p122, %p123
      %p125 = scmp.ne.s32.totalorder %s113, %s114
      %p126 = scmp.eq.s32.totalorder %s20, 7
      %p127 = por %p125, %p126
      %p129 = scmp.ne.s32.totalorder %s114, %s128
      %p130 = scmp.eq.s32.totalorder %s20, 0
      %p131 = por %p129, %p130
      %s133 = sadd.s32 %s132, 1
      %p136 = scmp.eq.s32.totalorder %s14, 7
      %p137 = scmp.ne.s32.totalorder %s132, %s134
      %p138 = scmp.eq.s32.totalorder %s14, 0
      %p139 = por %p137, %p138
      %p140 = scmp.ne.s32.totalorder %s132, %s134
      %p141 = scmp.eq.s32.totalorder %s19, 7
      %p142 = por %p140, %p141
      %p143 = scmp.ne.s32.totalorder %s134, %s135
      %p144 = scmp.eq.s32.totalorder %s19, 0
      %p145 = por %p143, %p144
      %p146 = scmp.ne.s32.totalorder %s134, %s135
      %p147 = scmp.eq.s32.totalorder %s20, 7
      %p148 = por %p146, %p147
      %p150 = scmp.ne.s32.totalorder %s135, %s149
      %p151 = scmp.eq.s32.totalorder %s20, 0
      %p152 = por %p150, %p151
      %p153 = scmp.le.s32.totalorder 1, %s14
      %p154 = scmp.lt.s32.totalorder %s14, 9
      %p155 = pnand %p153, %p154
      %p156 = pneg %p155
      // Predicated region
      $region9: #{encoder_forward.1} parent=5 // pred_check
        _
      $region10: #{encoder_forward.1} parent=5 // pred_check_branch
        %158 = sbr.rel (%p155) target = $region12
      $region11: #{encoder_forward.1} parent=5 // pred_region
        %s159 = ssub.s32 %s14, 1
        // Predicated region
        $region13: #{encoder_forward.1} parent=11 // pred_check
          %p160 = pneg %p61
        $region14: #{encoder_forward.1} parent=11 // pred_check_branch
          %162 = sbr.rel (%p160) target = $region16
        $region15: #{encoder_forward.1} parent=11 // pred_region
          %s164 = ssub.s32 16384, 16384
          %165 = vsyncadd [#allocation3], %s164
          %s166 = sshll.u32 [#allocation2], 4
          %s167 = int_to_ptr.vmem [resolvable:$true] %s166
          %172 = dma.hbm_to_vmem [thread:$0]  %s1, 16384, %s167, [#allocation3], 512, 512, 32
        $region16: #{encoder_forward.1} parent=11 // pred_fallthru
          _
        // Predicated region
        $region17: #{encoder_forward.1} parent=11 // pred_check
          %p173 = pneg %p82
        $region18: #{encoder_forward.1} parent=11 // pred_check_branch
          %175 = sbr.rel (%p173) target = $region20
        $region19: #{encoder_forward.1} parent=11 // pred_region
          %s177 = ssub.s32 16384, 16384
          %178 = vsyncadd [#allocation5], %s177
          %s179 = sshll.u32 [#allocation4], 4
          %s180 = int_to_ptr.vmem [resolvable:$true] %s179
          %185 = dma.hbm_to_vmem [thread:$0]  %s2, 16384, %s180, [#allocation5], 512, 512, 32
        $region20: #{encoder_forward.1} parent=11 // pred_fallthru
          _
        // Predicated region
        $region21: #{encoder_forward.1} parent=11 // pred_check
          %p186 = pneg %p103
        $region22: #{encoder_forward.1} parent=11 // pred_check_branch
          %188 = sbr.rel (%p186) target = $region24
        $region23: #{encoder_forward.1} parent=11 // pred_region
          _
        $region24: #{encoder_forward.1} parent=11 // pred_fallthru
          _
      $region12: #{encoder_forward.1} parent=5 // pred_fallthru
        _
      %p189 = scmp.lt.s32.totalorder %s14, 8
      // Predicated region
      $region25: #{encoder_forward.1} parent=5 // pred_check
        %p190 = pneg %p189
      $region26: #{encoder_forward.1} parent=5 // pred_check_branch
        %192 = sbr.rel (%p190) target = $region28
      $region27: #{encoder_forward.1} parent=5 // pred_region
        // Predicated region
        $region29: #{encoder_forward.1} parent=27 // pred_check
          %p193 = pneg %p34
        $region30: #{encoder_forward.1} parent=27 // pred_check_branch
          %195 = sbr.rel (%p193) target = $region32
        $region31: #{encoder_forward.1} parent=27 // pred_region
          %p196 = scmp.lt.s32.totalorder %s14, 7
          %s197 = scalar_select %p196, %s14, 7
          %s198 = smul.addr %s197, 8
          %s199 = scalar_lea.vmem %s0, %s198
        $region32: #{encoder_forward.1} parent=27 // pred_fallthru
          _
      $region28: #{encoder_forward.1} parent=5 // pred_fallthru
        _
      %p200 = scmp.le.s32.totalorder 1, %s14
      %p201 = scmp.lt.s32.totalorder %s14, 9
      %p202 = pnand %p200, %p201
      %p203 = pneg %p202
      // Predicated region
      $region33: #{encoder_forward.1} parent=5 // pred_check
        _
      $region34: #{encoder_forward.1} parent=5 // pred_check_branch
        %205 = sbr.rel (%p202) target = $region36
      $region35: #{encoder_forward.1} parent=5 // pred_region
        %s206 = ssub.s32 %s14, 1
        // Predicated region
        $region37: #{encoder_forward.1} parent=35 // pred_check
          %p207 = pneg %p61
        $region38: #{encoder_forward.1} parent=35 // pred_check_branch
          %209 = sbr.rel (%p207) target = $region40
        $region39: #{encoder_forward.1} parent=35 // pred_region
          %210 = dma.done [#allocation3], 16384
        $region40: #{encoder_forward.1} parent=35 // pred_fallthru
          _
        // Predicated region
        $region41: #{encoder_forward.1} parent=35 // pred_check
          %p211 = pneg %p82
        $region42: #{encoder_forward.1} parent=35 // pred_check_branch
          %213 = sbr.rel (%p211) target = $region44
        $region43: #{encoder_forward.1} parent=35 // pred_region
          %214 = dma.done [#allocation5], 16384
        $region44: #{encoder_forward.1} parent=35 // pred_fallthru
          _
        %p215 = scmp.lt.s32.totalorder %s19, 7
        %s216 = scalar_select %p215, %s19, 7
        %s217 = smul.addr %s216, 8
        %s218 = scalar_lea.vmem %s0, %s217
        %p219 = pneg %p40
        %p220 = pneg %p37
        %p221 = pneg %p61
        %p222 = pneg %p58
        %p223 = pneg %p82
        %p224 = pneg %p79
        %p225 = pneg %p103
        %p226 = pneg %p100
        %p227 = pneg %p124
        %p228 = pneg %p121
        %p229 = pneg %p145
        %p230 = pneg %p142
        %p231 = scmp.lt.s32.totalorder %s19, 7
        %s232 = scalar_select %p231, %s19, 7
        %s233 = smul.addr %s232, 8
        %s234 = scalar_lea.vmem %s0, %s233
        %p235 = scmp.eq.s32.totalorder %s19, 0
        // Predicated region
        $region45: #{encoder_forward.1} parent=35 // pred_check
          %p236 = pneg %p235
        $region46: #{encoder_forward.1} parent=35 // pred_check_branch
          %238 = sbr.rel (%p236) target = $region48
        $region47: #{encoder_forward.1} parent=35 // pred_region
          %239 = vst [vmem:[%s4] sm:$0xff] 0.0
          %240 = vst [vmem:[%s4 + $0x8] sm:$0xff] 0.0
          %241 = vst [vmem:[%s5] sm:$0xff] 0.0
          %242 = vst [vmem:[%s5 + $0x8] sm:$0xff] 0.0
        $region48: #{encoder_forward.1} parent=35 // pred_fallthru
          _
        %v243 = vld [vmem:[%s234] sm:$0xff]
        %v244 = vld [vmem:[%s4] sm:$0xff]
        %v245 = vld [vmem:[%s5] sm:$0xff]
        %v246 = vld [vmem:[#allocation2] sm:$0xff]
        %v247 = vld [vmem:[#allocation2 + $0x8] sm:$0xff]
        %v248 = vld [vmem:[#allocation2 + $0x10] sm:$0xff]
        %v249 = vld [vmem:[#allocation2 + $0x18] sm:$0xff]
        %v250 = vld [vmem:[#allocation2 + $0x20] sm:$0xff]
        %v251 = vld [vmem:[#allocation2 + $0x28] sm:$0xff]
        %v252 = vld [vmem:[#allocation2 + $0x30] sm:$0xff]
        %v253 = vld [vmem:[#allocation2 + $0x38] sm:$0xff]
        %v254 = vld [vmem:[#allocation2 + $0x40] sm:$0xff]
        %v255 = vld [vmem:[#allocation2 + $0x48] sm:$0xff]
        %v256 = vld [vmem:[#allocation2 + $0x50] sm:$0xff]
        %v257 = vld [vmem:[#allocation2 + $0x58] sm:$0xff]
        %v258 = vld [vmem:[#allocation2 + $0x60] sm:$0xff]
        %v259 = vld [vmem:[#allocation2 + $0x68] sm:$0xff]
        %v260 = vld [vmem:[#allocation2 + $0x70] sm:$0xff]
        %v261 = vld [vmem:[#allocation2 + $0x78] sm:$0xff]
        %v262 = vld [vmem:[#allocation2 + $0x80] sm:$0xff]
        %v263 = vld [vmem:[#allocation2 + $0x88] sm:$0xff]
        %v264 = vld [vmem:[#allocation2 + $0x90] sm:$0xff]
        %v265 = vld [vmem:[#allocation2 + $0x98] sm:$0xff]
        %v266 = vld [vmem:[#allocation2 + $0xa0] sm:$0xff]
        %v267 = vld [vmem:[#allocation2 + $0xa8] sm:$0xff]
        %v268 = vld [vmem:[#allocation2 + $0xb0] sm:$0xff]
        %v269 = vld [vmem:[#allocation2 + $0xb8] sm:$0xff]
        %v270 = vld [vmem:[#allocation2 + $0xc0] sm:$0xff]
        %v271 = vld [vmem:[#allocation2 + $0xc8] sm:$0xff]
        %v272 = vld [vmem:[#allocation2 + $0xd0] sm:$0xff]
        %v273 = vld [vmem:[#allocation2 + $0xd8] sm:$0xff]
        %v274 = vld [vmem:[#allocation2 + $0xe0] sm:$0xff]
        %v275 = vld [vmem:[#allocation2 + $0xe8] sm:$0xff]
        %v276 = vld [vmem:[#allocation2 + $0xf0] sm:$0xff]
        %v277 = vld [vmem:[#allocation2 + $0xf8] sm:$0xff]
        %v278 = vld [vmem:[#allocation2 + $0x100] sm:$0xff]
        %v279 = vld [vmem:[#allocation2 + $0x108] sm:$0xff]
        %v280 = vld [vmem:[#allocation2 + $0x110] sm:$0xff]
        %v281 = vld [vmem:[#allocation2 + $0x118] sm:$0xff]
        %v282 = vld [vmem:[#allocation2 + $0x120] sm:$0xff]
        %v283 = vld [vmem:[#allocation2 + $0x128] sm:$0xff]
        %v284 = vld [vmem:[#allocation2 + $0x130] sm:$0xff]
        %v285 = vld [vmem:[#allocation2 + $0x138] sm:$0xff]
        %v286 = vld [vmem:[#allocation2 + $0x140] sm:$0xff]
        %v287 = vld [vmem:[#allocation2 + $0x148] sm:$0xff]
        %v288 = vld [vmem:[#allocation2 + $0x150] sm:$0xff]
        %v289 = vld [vmem:[#allocation2 + $0x158] sm:$0xff]
        %v290 = vld [vmem:[#allocation2 + $0x160] sm:$0xff]
        %v291 = vld [vmem:[#allocation2 + $0x168] sm:$0xff]
        %v292 = vld [vmem:[#allocation2 + $0x170] sm:$0xff]
        %v293 = vld [vmem:[#allocation2 + $0x178] sm:$0xff]
        %v294 = vld [vmem:[#allocation2 + $0x180] sm:$0xff]
        %v295 = vld [vmem:[#allocation2 + $0x188] sm:$0xff]
        %v296 = vld [vmem:[#allocation2 + $0x190] sm:$0xff]
        %v297 = vld [vmem:[#allocation2 + $0x198] sm:$0xff]
        %v298 = vld [vmem:[#allocation2 + $0x1a0] sm:$0xff]
        %v299 = vld [vmem:[#allocation2 + $0x1a8] sm:$0xff]
        %v300 = vld [vmem:[#allocation2 + $0x1b0] sm:$0xff]
        %v301 = vld [vmem:[#allocation2 + $0x1b8] sm:$0xff]
        %v302 = vld [vmem:[#allocation2 + $0x1c0] sm:$0xff]
        %v303 = vld [vmem:[#allocation2 + $0x1c8] sm:$0xff]
        %v304 = vld [vmem:[#allocation2 + $0x1d0] sm:$0xff]
        %v305 = vld [vmem:[#allocation2 + $0x1d8] sm:$0xff]
        %v306 = vld [vmem:[#allocation2 + $0x1e0] sm:$0xff]
        %v307 = vld [vmem:[#allocation2 + $0x1e8] sm:$0xff]
        %v308 = vld [vmem:[#allocation2 + $0x1f0] sm:$0xff]
        %v309 = vld [vmem:[#allocation2 + $0x1f8] sm:$0xff]
        %v310 = vld [vmem:[#allocation4] sm:$0xff]
        %v311 = vld [vmem:[#allocation4 + $0x8] sm:$0xff]
        %v312 = vld [vmem:[#allocation4 + $0x10] sm:$0xff]
        %v313 = vld [vmem:[#allocation4 + $0x18] sm:$0xff]
        %v314 = vld [vmem:[#allocation4 + $0x20] sm:$0xff]
        %v315 = vld [vmem:[#allocation4 + $0x28] sm:$0xff]
        %v316 = vld [vmem:[#allocation4 + $0x30] sm:$0xff]
        %v317 = vld [vmem:[#allocation4 + $0x38] sm:$0xff]
        %v318 = vld [vmem:[#allocation4 + $0x40] sm:$0xff]
        %v319 = vld [vmem:[#allocation4 + $0x48] sm:$0xff]
        %v320 = vld [vmem:[#allocation4 + $0x50] sm:$0xff]
        %v321 = vld [vmem:[#allocation4 + $0x58] sm:$0xff]
        %v322 = vld [vmem:[#allocation4 + $0x60] sm:$0xff]
        %v323 = vld [vmem:[#allocation4 + $0x68] sm:$0xff]
        %v324 = vld [vmem:[#allocation4 + $0x70] sm:$0xff]
        %v325 = vld [vmem:[#allocation4 + $0x78] sm:$0xff]
        %v326 = vld [vmem:[#allocation4 + $0x80] sm:$0xff]
        %v327 = vld [vmem:[#allocation4 + $0x88] sm:$0xff]
        %v328 = vld [vmem:[#allocation4 + $0x90] sm:$0xff]
        %v329 = vld [vmem:[#allocation4 + $0x98] sm:$0xff]
        %v330 = vld [vmem:[#allocation4 + $0xa0] sm:$0xff]
        %v331 = vld [vmem:[#allocation4 + $0xa8] sm:$0xff]
        %v332 = vld [vmem:[#allocation4 + $0xb0] sm:$0xff]
        %v333 = vld [vmem:[#allocation4 + $0xb8] sm:$0xff]
        %v334 = vld [vmem:[#allocation4 + $0xc0] sm:$0xff]
        %v335 = vld [vmem:[#allocation4 + $0xc8] sm:$0xff]
        %v336 = vld [vmem:[#allocation4 + $0xd0] sm:$0xff]
        %v337 = vld [vmem:[#allocation4 + $0xd8] sm:$0xff]
        %v338 = vld [vmem:[#allocation4 + $0xe0] sm:$0xff]
        %v339 = vld [vmem:[#allocation4 + $0xe8] sm:$0xff]
        %v340 = vld [vmem:[#allocation4 + $0xf0] sm:$0xff]
        %v341 = vld [vmem:[#allocation4 + $0xf8] sm:$0xff]
        %v342 = vld [vmem:[#allocation4 + $0x100] sm:$0xff]
        %v343 = vld [vmem:[#allocation4 + $0x108] sm:$0xff]
        %v344 = vld [vmem:[#allocation4 + $0x110] sm:$0xff]
        %v345 = vld [vmem:[#allocation4 + $0x118] sm:$0xff]
        %v346 = vld [vmem:[#allocation4 + $0x120] sm:$0xff]
        %v347 = vld [vmem:[#allocation4 + $0x128] sm:$0xff]
        %v348 = vld [vmem:[#allocation4 + $0x130] sm:$0xff]
        %v349 = vld [vmem:[#allocation4 + $0x138] sm:$0xff]
        %v350 = vld [vmem:[#allocation4 + $0x140] sm:$0xff]
        %v351 = vld [vmem:[#allocation4 + $0x148] sm:$0xff]
        %v352 = vld [vmem:[#allocation4 + $0x150] sm:$0xff]
        %v353 = vld [vmem:[#allocation4 + $0x158] sm:$0xff]
        %v354 = vld [vmem:[#allocation4 + $0x160] sm:$0xff]
        %v355 = vld [vmem:[#allocation4 + $0x168] sm:$0xff]
        %v356 = vld [vmem:[#allocation4 + $0x170] sm:$0xff]
        %v357 = vld [vmem:[#allocation4 + $0x178] sm:$0xff]
        %v358 = vld [vmem:[#allocation4 + $0x180] sm:$0xff]
        %v359 = vld [vmem:[#allocation4 + $0x188] sm:$0xff]
        %v360 = vld [vmem:[#allocation4 + $0x190] sm:$0xff]
        %v361 = vld [vmem:[#allocation4 + $0x198] sm:$0xff]
        %v362 = vld [vmem:[#allocation4 + $0x1a0] sm:$0xff]
        %v363 = vld [vmem:[#allocation4 + $0x1a8] sm:$0xff]
        %v364 = vld [vmem:[#allocation4 + $0x1b0] sm:$0xff]
        %v365 = vld [vmem:[#allocation4 + $0x1b8] sm:$0xff]
        %v366 = vld [vmem:[#allocation4 + $0x1c0] sm:$0xff]
        %v367 = vld [vmem:[#allocation4 + $0x1c8] sm:$0xff]
        %v368 = vld [vmem:[#allocation4 + $0x1d0] sm:$0xff]
        %v369 = vld [vmem:[#allocation4 + $0x1d8] sm:$0xff]
        %v370 = vld [vmem:[#allocation4 + $0x1e0] sm:$0xff]
        %v371 = vld [vmem:[#allocation4 + $0x1e8] sm:$0xff]
        %v372 = vld [vmem:[#allocation4 + $0x1f0] sm:$0xff]
        %v373 = vld [vmem:[#allocation4 + $0x1f8] sm:$0xff]
        %374 = vmatprep.subr.mxu0 %v311
        %375 = vmatpush1.msra.mxu0 %v310
        %376 = vmatprep.subr.mxu0 %v315
        %377 = vmatpush1.msra.mxu0 %v314
        %378 = vmatprep.subr.mxu0 %v319
        %379 = vmatpush1.msra.mxu0 %v318
        %380 = vmatprep.subr.mxu0 %v323
        %381 = vmatpush1.msra.mxu0 %v322
        %382 = vmatprep.subr.mxu0 %v327
        %383 = vmatpush1.msra.mxu0 %v326
        %384 = vmatprep.subr.mxu0 %v331
        %385 = vmatpush1.msra.mxu0 %v330
        %386 = vmatprep.subr.mxu0 %v335
        %387 = vmatpush1.msra.mxu0 %v334
        %388 = vmatprep.subr.mxu0 %v339
        %389 = vmatpush1.msra.mxu0 %v338
        %390 = vmatprep.subr.mxu0 %v343
        %391 = vmatpush1.msra.mxu0 %v342
        %392 = vmatprep.subr.mxu0 %v347
        %393 = vmatpush1.msra.mxu0 %v346
        %394 = vmatprep.subr.mxu0 %v351
        %395 = vmatpush1.msra.mxu0 %v350
        %396 = vmatprep.subr.mxu0 %v355
        %397 = vmatpush1.msra.mxu0 %v354
        %398 = vmatprep.subr.mxu0 %v359
        %399 = vmatpush1.msra.mxu0 %v358
        %400 = vmatprep.subr.mxu0 %v363
        %401 = vmatpush1.msra.mxu0 %v362
        %402 = vmatprep.subr.mxu0 %v367
        %403 = vmatpush1.msra.mxu0 %v366
        %404 = vmatprep.subr.mxu0 %v371
        %405 = vmatpush1.msra.mxu0 %v370
        %406 = vmatprep.subr.mxu0 0.0
        %407 = vmatpush1.msra.mxu0 0.0
        %408 = vmatprep.subr.mxu0 0.0
        %409 = vmatpush1.msra.mxu0 0.0
        %410 = vmatprep.subr.mxu0 0.0
        %411 = vmatpush1.msra.mxu0 0.0
        %412 = vmatprep.subr.mxu0 0.0
        %413 = vmatpush1.msra.mxu0 0.0
        %414 = vmatprep.subr.mxu0 0.0
        %415 = vmatpush1.msra.mxu0 0.0
        %416 = vmatprep.subr.mxu0 0.0
        %417 = vmatpush1.msra.mxu0 0.0
        %418 = vmatprep.subr.mxu0 0.0
        %419 = vmatpush1.msra.mxu0 0.0
        %420 = vmatprep.subr.mxu0 0.0
        %421 = vmatpush1.msra.mxu0 0.0
        %422 = vmatprep.subr.mxu0 0.0
        %423 = vmatpush1.msra.mxu0 0.0
        %424 = vmatprep.subr.mxu0 0.0
        %425 = vmatpush1.msra.mxu0 0.0
        %426 = vmatprep.subr.mxu0 0.0
        %427 = vmatpush1.msra.mxu0 0.0
        %428 = vmatprep.subr.mxu0 0.0
        %429 = vmatpush1.msra.mxu0 0.0
        %430 = vmatprep.subr.mxu0 0.0
        %431 = vmatpush1.msra.mxu0 0.0
        %432 = vmatprep.subr.mxu0 0.0
        %433 = vmatpush1.msra.mxu0 0.0
        %434 = vmatprep.subr.mxu0 0.0
        %435 = vmatpush1.msra.mxu0 0.0
        %436 = vmatprep.subr.mxu0 0.0
        %437 = vmatpush1.msra.mxu0 0.0
        %438 = vmatprep.mubr.f32.mxu0 0.0
        %439 = vmatmul.mubr.f32.gmra.mrb[0].mxu0 %v244
        %v440 = vpop.f32.mrb[0].mxu0
        %v441 = vadd.f32 0.0, %v440
        %v442 = vpop.f32.mrb[0].mxu0
        %v443 = vadd.f32 0.0, %v442
        %444 = vdwg.mxu0
        %445 = vmatprep.subr.mxu0 %v313
        %446 = vmatpush1.msra.mxu0 %v312
        %447 = vmatprep.subr.mxu0 %v317
        %448 = vmatpush1.msra.mxu0 %v316
        %449 = vmatprep.subr.mxu0 %v321
        %450 = vmatpush1.msra.mxu0 %v320
        %451 = vmatprep.subr.mxu0 %v325
        %452 = vmatpush1.msra.mxu0 %v324
        %453 = vmatprep.subr.mxu0 %v329
        %454 = vmatpush1.msra.mxu0 %v328
        %455 = vmatprep.subr.mxu0 %v333
        %456 = vmatpush1.msra.mxu0 %v332
        %457 = vmatprep.subr.mxu0 %v337
        %458 = vmatpush1.msra.mxu0 %v336
        %459 = vmatprep.subr.mxu0 %v341
        %460 = vmatpush1.msra.mxu0 %v340
        %461 = vmatprep.subr.mxu0 %v345
        %462 = vmatpush1.msra.mxu0 %v344
        %463 = vmatprep.subr.mxu0 %v349
        %464 = vmatpush1.msra.mxu0 %v348
        %465 = vmatprep.subr.mxu0 %v353
        %466 = vmatpush1.msra.mxu0 %v352
        %467 = vmatprep.subr.mxu0 %v357
        %468 = vmatpush1.msra.mxu0 %v356
        %469 = vmatprep.subr.mxu0 %v361
        %470 = vmatpush1.msra.mxu0 %v360
        %471 = vmatprep.subr.mxu0 %v365
        %472 = vmatpush1.msra.mxu0 %v364
        %473 = vmatprep.subr.mxu0 %v369
        %474 = vmatpush1.msra.mxu0 %v368
        %475 = vmatprep.subr.mxu0 %v373
        %476 = vmatpush1.msra.mxu0 %v372
        %477 = vmatprep.subr.mxu0 0.0
        %478 = vmatpush1.msra.mxu0 0.0
        %479 = vmatprep.subr.mxu0 0.0
        %480 = vmatpush1.msra.mxu0 0.0
        %481 = vmatprep.subr.mxu0 0.0
        %482 = vmatpush1.msra.mxu0 0.0
        %483 = vmatprep.subr.mxu0 0.0
        %484 = vmatpush1.msra.mxu0 0.0
        %485 = vmatprep.subr.mxu0 0.0
        %486 = vmatpush1.msra.mxu0 0.0
        %487 = vmatprep.subr.mxu0 0.0
        %488 = vmatpush1.msra.mxu0 0.0
        %489 = vmatprep.subr.mxu0 0.0
        %490 = vmatpush1.msra.mxu0 0.0
        %491 = vmatprep.subr.mxu0 0.0
        %492 = vmatpush1.msra.mxu0 0.0
        %493 = vmatprep.subr.mxu0 0.0
        %494 = vmatpush1.msra.mxu0 0.0
        %495 = vmatprep.subr.mxu0 0.0
        %496 = vmatpush1.msra.mxu0 0.0
        %497 = vmatprep.subr.mxu0 0.0
        %498 = vmatpush1.msra.mxu0 0.0
        %499 = vmatprep.subr.mxu0 0.0
        %500 = vmatpush1.msra.mxu0 0.0
        %501 = vmatprep.subr.mxu0 0.0
        %502 = vmatpush1.msra.mxu0 0.0
        %503 = vmatprep.subr.mxu0 0.0
        %504 = vmatpush1.msra.mxu0 0.0
        %505 = vmatprep.subr.mxu0 0.0
        %506 = vmatpush1.msra.mxu0 0.0
        %507 = vmatprep.subr.mxu0 0.0
        %508 = vmatpush1.msra.mxu0 0.0
        %509 = vmatprep.mubr.f32.mxu0 0.0
        %510 = vmatmul.mubr.f32.gmra.mrb[0].mxu0 %v244
        %v511 = vpop.f32.mrb[0].mxu0
        %v512 = vadd.f32 0.0, %v511
        %v513 = vpop.f32.mrb[0].mxu0
        %v514 = vadd.f32 0.0, %v513
        %515 = vdwg.mxu0
        %516 = vmatprep.subr.mxu0 %v247
        %517 = vmatpush1.msra.mxu0 %v246
        %518 = vmatprep.subr.mxu0 %v251
        %519 = vmatpush1.msra.mxu0 %v250
        %520 = vmatprep.subr.mxu0 %v255
        %521 = vmatpush1.msra.mxu0 %v254
        %522 = vmatprep.subr.mxu0 %v259
        %523 = vmatpush1.msra.mxu0 %v258
        %524 = vmatprep.subr.mxu0 %v263
        %525 = vmatpush1.msra.mxu0 %v262
        %526 = vmatprep.subr.mxu0 %v267
        %527 = vmatpush1.msra.mxu0 %v266
        %528 = vmatprep.subr.mxu0 %v271
        %529 = vmatpush1.msra.mxu0 %v270
        %530 = vmatprep.subr.mxu0 %v275
        %531 = vmatpush1.msra.mxu0 %v274
        %532 = vmatprep.subr.mxu0 %v279
        %533 = vmatpush1.msra.mxu0 %v278
        %534 = vmatprep.subr.mxu0 %v283
        %535 = vmatpush1.msra.mxu0 %v282
        %536 = vmatprep.subr.mxu0 %v287
        %537 = vmatpush1.msra.mxu0 %v286
        %538 = vmatprep.subr.mxu0 %v291
        %539 = vmatpush1.msra.mxu0 %v290
        %540 = vmatprep.subr.mxu0 %v295
        %541 = vmatpush1.msra.mxu0 %v294
        %542 = vmatprep.subr.mxu0 %v299
        %543 = vmatpush1.msra.mxu0 %v298
        %544 = vmatprep.subr.mxu0 %v303
        %545 = vmatpush1.msra.mxu0 %v302
        %546 = vmatprep.subr.mxu0 %v307
        %547 = vmatpush1.msra.mxu0 %v306
        %548 = vmatprep.subr.mxu0 0.0
        %549 = vmatpush1.msra.mxu0 0.0
        %550 = vmatprep.subr.mxu0 0.0
        %551 = vmatpush1.msra.mxu0 0.0
        %552 = vmatprep.subr.mxu0 0.0
        %553 = vmatpush1.msra.mxu0 0.0
        %554 = vmatprep.subr.mxu0 0.0
        %555 = vmatpush1.msra.mxu0 0.0
        %556 = vmatprep.subr.mxu0 0.0
        %557 = vmatpush1.msra.mxu0 0.0
        %558 = vmatprep.subr.mxu0 0.0
        %559 = vmatpush1.msra.mxu0 0.0
        %560 = vmatprep.subr.mxu0 0.0
        %561 = vmatpush1.msra.mxu0 0.0
        %562 = vmatprep.subr.mxu0 0.0
        %563 = vmatpush1.msra.mxu0 0.0
        %564 = vmatprep.subr.mxu0 0.0
        %565 = vmatpush1.msra.mxu0 0.0
        %566 = vmatprep.subr.mxu0 0.0
        %567 = vmatpush1.msra.mxu0 0.0
        %568 = vmatprep.subr.mxu0 0.0
        %569 = vmatpush1.msra.mxu0 0.0
        %570 = vmatprep.subr.mxu0 0.0
        %571 = vmatpush1.msra.mxu0 0.0
        %572 = vmatprep.subr.mxu0 0.0
        %573 = vmatpush1.msra.mxu0 0.0
        %574 = vmatprep.subr.mxu0 0.0
        %575 = vmatpush1.msra.mxu0 0.0
        %576 = vmatprep.subr.mxu0 0.0
        %577 = vmatpush1.msra.mxu0 0.0
        %578 = vmatprep.subr.mxu0 0.0
        %579 = vmatpush1.msra.mxu0 0.0
        %580 = vmatprep.mubr.f32.mxu0 0.0
        %581 = vmatmul.mubr.f32.gmra.mrb[0].mxu0 %v243
        %v582 = vpop.f32.mrb[0].mxu0
        %v583 = vadd.f32 %v441, %v582
        %v584 = vpop.f32.mrb[0].mxu0
        %v585 = vadd.f32 %v443, %v584
        %586 = vdwg.mxu0
        %587 = vmatprep.subr.mxu0 %v249
        %588 = vmatpush1.msra.mxu0 %v248
        %589 = vmatprep.subr.mxu0 %v253
        %590 = vmatpush1.msra.mxu0 %v252
        %591 = vmatprep.subr.mxu0 %v257
        %592 = vmatpush1.msra.mxu0 %v256
        %593 = vmatprep.subr.mxu0 %v261
        %594 = vmatpush1.msra.mxu0 %v260
        %595 = vmatprep.subr.mxu0 %v265
        %596 = vmatpush1.msra.mxu0 %v264
        %597 = vmatprep.subr.mxu0 %v269
        %598 = vmatpush1.msra.mxu0 %v268
        %599 = vmatprep.subr.mxu0 %v273
        %600 = vmatpush1.msra.mxu0 %v272
        %601 = vmatprep.subr.mxu0 %v277
        %602 = vmatpush1.msra.mxu0 %v276
        %603 = vmatprep.subr.mxu0 %v281
        %604 = vmatpush1.msra.mxu0 %v280
        %605 = vmatprep.subr.mxu0 %v285
        %606 = vmatpush1.msra.mxu0 %v284
        %607 = vmatprep.subr.mxu0 %v289
        %608 = vmatpush1.msra.mxu0 %v288
        %609 = vmatprep.subr.mxu0 %v293
        %610 = vmatpush1.msra.mxu0 %v292
        %611 = vmatprep.subr.mxu0 %v297
        %612 = vmatpush1.msra.mxu0 %v296
        %613 = vmatprep.subr.mxu0 %v301
        %614 = vmatpush1.msra.mxu0 %v300
        %615 = vmatprep.subr.mxu0 %v305
        %616 = vmatpush1.msra.mxu0 %v304
        %617 = vmatprep.subr.mxu0 %v309
        %618 = vmatpush1.msra.mxu0 %v308
        %619 = vmatprep.subr.mxu0 0.0
        %620 = vmatpush1.msra.mxu0 0.0
        %621 = vmatprep.subr.mxu0 0.0
        %622 = vmatpush1.msra.mxu0 0.0
        %623 = vmatprep.subr.mxu0 0.0
        %624 = vmatpush1.msra.mxu0 0.0
        %625 = vmatprep.subr.mxu0 0.0
        %626 = vmatpush1.msra.mxu0 0.0
        %627 = vmatprep.subr.mxu0 0.0
        %628 = vmatpush1.msra.mxu0 0.0
        %629 = vmatprep.subr.mxu0 0.0
        %630 = vmatpush1.msra.mxu0 0.0
        %631 = vmatprep.subr.mxu0 0.0
        %632 = vmatpush1.msra.mxu0 0.0
        %633 = vmatprep.subr.mxu0 0.0
        %634 = vmatpush1.msra.mxu0 0.0
        %635 = vmatprep.subr.mxu0 0.0
        %636 = vmatpush1.msra.mxu0 0.0
        %637 = vmatprep.subr.mxu0 0.0
        %638 = vmatpush1.msra.mxu0 0.0
        %639 = vmatprep.subr.mxu0 0.0
        %640 = vmatpush1.msra.mxu0 0.0
        %641 = vmatprep.subr.mxu0 0.0
        %642 = vmatpush1.msra.mxu0 0.0
        %643 = vmatprep.subr.mxu0 0.0
        %644 = vmatpush1.msra.mxu0 0.0
        %645 = vmatprep.subr.mxu0 0.0
        %646 = vmatpush1.msra.mxu0 0.0
        %647 = vmatprep.subr.mxu0 0.0
        %648 = vmatpush1.msra.mxu0 0.0
        %649 = vmatprep.subr.mxu0 0.0
        %650 = vmatpush1.msra.mxu0 0.0
        %651 = vmatprep.mubr.f32.mxu0 0.0
        %652 = vmatmul.mubr.f32.gmra.mrb[0].mxu0 %v243
        %v653 = vpop.f32.mrb[0].mxu0
        %v654 = vadd.f32 %v512, %v653
        %v655 = vpop.f32.mrb[0].mxu0
        %v656 = vadd.f32 %v514, %v655
        %657 = vdwg.mxu0
        %v658 = vld [vmem:[%s3] sm:$0xf]
        %v660 = vlaneseq
        %v661 = vshrl.u32 %v660, 7
        %v662 = vsub.s32 0, %v661
        %v663 = vrot.slane %v658, %v662
        %v664 = vlaneseq
        %v665 = vshrl.u32 %v664, 7
        %v666 = vsub.s32 1, %v665
        %v667 = vrot.slane %v658, %v666
        %v668 = vlaneseq
        %v669 = vshrl.u32 %v668, 7
        %v670 = vsub.s32 2, %v669
        %v671 = vrot.slane %v658, %v670
        %v672 = vlaneseq
        %v673 = vshrl.u32 %v672, 7
        %v674 = vsub.s32 3, %v673
        %v675 = vrot.slane %v658, %v674
        %v680 = vadd.f32 %v583, %v663
        %v681 = vadd.f32 %v585, %v667
        %v682 = vadd.f32 %v654, %v671
        %v683 = vadd.f32 %v656, %v675
        %v684 = vxor.u32 %v680, 2147483648
        %v685 = vmul.f32 %v684, 1.442695
        %v686 = vpow.pop %v685
        %v687 = vadd.f32 %v686, 1.0
        %v688 = vrcp.pop %v687
        %v689 = vmul.f32 1.0, %v688
        %v690 = vxor.u32 %v681, 2147483648
        %v691 = vmul.f32 %v690, 1.442695
        %v692 = vpow.pop %v691
        %v693 = vadd.f32 %v692, 1.0
        %v694 = vrcp.pop %v693
        %v695 = vmul.f32 1.0, %v694
        %v696 = vtanh.pop %v682
        %v697 = vxor.u32 %v683, 2147483648
        %v698 = vmul.f32 %v697, 1.442695
        %v699 = vpow.pop %v698
        %v700 = vadd.f32 %v699, 1.0
        %v701 = vrcp.pop %v700
        %v702 = vmul.f32 1.0, %v701
        %v703 = vmul.f32 %v695, %v245
        %v704 = vmul.f32 %v689, %v696
        %v705 = vadd.f32 %v703, %v704
        %v706 = vtanh.pop %v705
        %v707 = vmul.f32 %v702, %v706
        %708 = vst [vmem:[%s4] sm:$0xff] %v707
        %709 = vst [vmem:[%s5] sm:$0xff] %v705
        %s710 = scalar_lea.vmem %s4, 8
        %v711 = vld [vmem:[%s710] sm:$0xff]
        %s712 = scalar_lea.vmem %s5, 8
        %v713 = vld [vmem:[%s712] sm:$0xff]
        %s714 = scalar_lea.vmem [#allocation2], 512
        %v715 = vld [vmem:[%s714] sm:$0xff]
        %v716 = vld [vmem:[%s714 + $0x8] sm:$0xff]
        %v717 = vld [vmem:[%s714 + $0x10] sm:$0xff]
        %v718 = vld [vmem:[%s714 + $0x18] sm:$0xff]
        %v719 = vld [vmem:[%s714 + $0x20] sm:$0xff]
        %v720 = vld [vmem:[%s714 + $0x28] sm:$0xff]
        %v721 = vld [vmem:[%s714 + $0x30] sm:$0xff]
        %v722 = vld [vmem:[%s714 + $0x38] sm:$0xff]
        %v723 = vld [vmem:[%s714 + $0x40] sm:$0xff]
        %v724 = vld [vmem:[%s714 + $0x48] sm:$0xff]
        %v725 = vld [vmem:[%s714 + $0x50] sm:$0xff]
        %v726 = vld [vmem:[%s714 + $0x58] sm:$0xff]
        %v727 = vld [vmem:[%s714 + $0x60] sm:$0xff]
        %v728 = vld [vmem:[%s714 + $0x68] sm:$0xff]
        %v729 = vld [vmem:[%s714 + $0x70] sm:$0xff]
        %v730 = vld [vmem:[%s714 + $0x78] sm:$0xff]
        %v731 = vld [vmem:[%s714 + $0x80] sm:$0xff]
        %v732 = vld [vmem:[%s714 + $0x88] sm:$0xff]
        %v733 = vld [vmem:[%s714 + $0x90] sm:$0xff]
        %v734 = vld [vmem:[%s714 + $0x98] sm:$0xff]
        %v735 = vld [vmem:[%s714 + $0xa0] sm:$0xff]
        %v736 = vld [vmem:[%s714 + $0xa8] sm:$0xff]
        %v737 = vld [vmem:[%s714 + $0xb0] sm:$0xff]
        %v738 = vld [vmem:[%s714 + $0xb8] sm:$0xff]
        %v739 = vld [vmem:[%s714 + $0xc0] sm:$0xff]
        %v740 = vld [vmem:[%s714 + $0xc8] sm:$0xff]
        %v741 = vld [vmem:[%s714 + $0xd0] sm:$0xff]
        %v742 = vld [vmem:[%s714 + $0xd8] sm:$0xff]
        %v743 = vld [vmem:[%s714 + $0xe0] sm:$0xff]
        %v744 = vld [vmem:[%s714 + $0xe8] sm:$0xff]
        %v745 = vld [vmem:[%s714 + $0xf0] sm:$0xff]
        %v746 = vld [vmem:[%s714 + $0xf8] sm:$0xff]
        %v747 = vld [vmem:[%s714 + $0x100] sm:$0xff]
        %v748 = vld [vmem:[%s714 + $0x108] sm:$0xff]
        %v749 = vld [vmem:[%s714 + $0x110] sm:$0xff]
        %v750 = vld [vmem:[%s714 + $0x118] sm:$0xff]
        %v751 = vld [vmem:[%s714 + $0x120] sm:$0xff]
        %v752 = vld [vmem:[%s714 + $0x128] sm:$0xff]
        %v753 = vld [vmem:[%s714 + $0x130] sm:$0xff]
        %v754 = vld [vmem:[%s714 + $0x138] sm:$0xff]
        %v755 = vld [vmem:[%s714 + $0x140] sm:$0xff]
        %v756 = vld [vmem:[%s714 + $0x148] sm:$0xff]
        %v757 = vld [vmem:[%s714 + $0x150] sm:$0xff]
        %v758 = vld [vmem:[%s714 + $0x158] sm:$0xff]
        %v759 = vld [vmem:[%s714 + $0x160] sm:$0xff]
        %v760 = vld [vmem:[%s714 + $0x168] sm:$0xff]
        %v761 = vld [vmem:[%s714 + $0x170] sm:$0xff]
        %v762 = vld [vmem:[%s714 + $0x178] sm:$0xff]
        %v763 = vld [vmem:[%s714 + $0x180] sm:$0xff]
        %v764 = vld [vmem:[%s714 + $0x188] sm:$0xff]
        %v765 = vld [vmem:[%s714 + $0x190] sm:$0xff]
        %v766 = vld [vmem:[%s714 + $0x198] sm:$0xff]
        %v767 = vld [vmem:[%s714 + $0x1a0] sm:$0xff]
        %v768 = vld [vmem:[%s714 + $0x1a8] sm:$0xff]
        %v769 = vld [vmem:[%s714 + $0x1b0] sm:$0xff]
        %v770 = vld [vmem:[%s714 + $0x1b8] sm:$0xff]
        %v771 = vld [vmem:[%s714 + $0x1c0] sm:$0xff]
        %v772 = vld [vmem:[%s714 + $0x1c8] sm:$0xff]
        %v773 = vld [vmem:[%s714 + $0x1d0] sm:$0xff]
        %v774 = vld [vmem:[%s714 + $0x1d8] sm:$0xff]
        %v775 = vld [vmem:[%s714 + $0x1e0] sm:$0xff]
        %v776 = vld [vmem:[%s714 + $0x1e8] sm:$0xff]
        %v777 = vld [vmem:[%s714 + $0x1f0] sm:$0xff]
        %v778 = vld [vmem:[%s714 + $0x1f8] sm:$0xff]
        %s779 = scalar_lea.vmem [#allocation4], 512
        %v780 = vld [vmem:[%s779] sm:$0xff]
        %v781 = vld [vmem:[%s779 + $0x8] sm:$0xff]
        %v782 = vld [vmem:[%s779 + $0x10] sm:$0xff]
        %v783 = vld [vmem:[%s779 + $0x18] sm:$0xff]
        %v784 = vld [vmem:[%s779 + $0x20] sm:$0xff]
        %v785 = vld [vmem:[%s779 + $0x28] sm:$0xff]
        %v786 = vld [vmem:[%s779 + $0x30] sm:$0xff]
        %v787 = vld [vmem:[%s779 + $0x38] sm:$0xff]
        %v788 = vld [vmem:[%s779 + $0x40] sm:$0xff]
        %v789 = vld [vmem:[%s779 + $0x48] sm:$0xff]
        %v790 = vld [vmem:[%s779 + $0x50] sm:$0xff]
        %v791 = vld [vmem:[%s779 + $0x58] sm:$0xff]
        %v792 = vld [vmem:[%s779 + $0x60] sm:$0xff]
        %v793 = vld [vmem:[%s779 + $0x68] sm:$0xff]
        %v794 = vld [vmem:[%s779 + $0x70] sm:$0xff]
        %v795 = vld [vmem:[%s779 + $0x78] sm:$0xff]
        %v796 = vld [vmem:[%s779 + $0x80] sm:$0xff]
        %v797 = vld [vmem:[%s779 + $0x88] sm:$0xff]
        %v798 = vld [vmem:[%s779 + $0x90] sm:$0xff]
        %v799 = vld [vmem:[%s779 + $0x98] sm:$0xff]
        %v800 = vld [vmem:[%s779 + $0xa0] sm:$0xff]
        %v801 = vld [vmem:[%s779 + $0xa8] sm:$0xff]
        %v802 = vld [vmem:[%s779 + $0xb0] sm:$0xff]
        %v803 = vld [vmem:[%s779 + $0xb8] sm:$0xff]
        %v804 = vld [vmem:[%s779 + $0xc0] sm:$0xff]
        %v805 = vld [vmem:[%s779 + $0xc8] sm:$0xff]
        %v806 = vld [vmem:[%s779 + $0xd0] sm:$0xff]
        %v807 = vld [vmem:[%s779 + $0xd8] sm:$0xff]
        %v808 = vld [vmem:[%s779 + $0xe0] sm:$0xff]
        %v809 = vld [vmem:[%s779 + $0xe8] sm:$0xff]
        %v810 = vld [vmem:[%s779 + $0xf0] sm:$0xff]
        %v811 = vld [vmem:[%s779 + $0xf8] sm:$0xff]
        %v812 = vld [vmem:[%s779 + $0x100] sm:$0xff]
        %v813 = vld [vmem:[%s779 + $0x108] sm:$0xff]
        %v814 = vld [vmem:[%s779 + $0x110] sm:$0xff]
        %v815 = vld [vmem:[%s779 + $0x118] sm:$0xff]
        %v816 = vld [vmem:[%s779 + $0x120] sm:$0xff]
        %v817 = vld [vmem:[%s779 + $0x128] sm:$0xff]
        %v818 = vld [vmem:[%s779 + $0x130] sm:$0xff]
        %v819 = vld [vmem:[%s779 + $0x138] sm:$0xff]
        %v820 = vld [vmem:[%s779 + $0x140] sm:$0xff]
        %v821 = vld [vmem:[%s779 + $0x148] sm:$0xff]
        %v822 = vld [vmem:[%s779 + $0x150] sm:$0xff]
        %v823 = vld [vmem:[%s779 + $0x158] sm:$0xff]
        %v824 = vld [vmem:[%s779 + $0x160] sm:$0xff]
        %v825 = vld [vmem:[%s779 + $0x168] sm:$0xff]
        %v826 = vld [vmem:[%s779 + $0x170] sm:$0xff]
        %v827 = vld [vmem:[%s779 + $0x178] sm:$0xff]
        %v828 = vld [vmem:[%s779 + $0x180] sm:$0xff]
        %v829 = vld [vmem:[%s779 + $0x188] sm:$0xff]
        %v830 = vld [vmem:[%s779 + $0x190] sm:$0xff]
        %v831 = vld [vmem:[%s779 + $0x198] sm:$0xff]
        %v832 = vld [vmem:[%s779 + $0x1a0] sm:$0xff]
        %v833 = vld [vmem:[%s779 + $0x1a8] sm:$0xff]
        %v834 = vld [vmem:[%s779 + $0x1b0] sm:$0xff]
        %v835 = vld [vmem:[%s779 + $0x1b8] sm:$0xff]
        %v836 = vld [vmem:[%s779 + $0x1c0] sm:$0xff]
        %v837 = vld [vmem:[%s779 + $0x1c8] sm:$0xff]
        %v838 = vld [vmem:[%s779 + $0x1d0] sm:$0xff]
        %v839 = vld [vmem:[%s779 + $0x1d8] sm:$0xff]
        %v840 = vld [vmem:[%s779 + $0x1e0] sm:$0xff]
        %v841 = vld [vmem:[%s779 + $0x1e8] sm:$0xff]
        %v842 = vld [vmem:[%s779 + $0x1f0] sm:$0xff]
        %v843 = vld [vmem:[%s779 + $0x1f8] sm:$0xff]
        %844 = vmatprep.subr.mxu0 %v781
        %845 = vmatpush1.msra.mxu0 %v780
        %846 = vmatprep.subr.mxu0 %v785
        %847 = vmatpush1.msra.mxu0 %v784
        %848 = vmatprep.subr.mxu0 %v789
        %849 = vmatpush1.msra.mxu0 %v788
        %850 = vmatprep.subr.mxu0 %v793
        %851 = vmatpush1.msra.mxu0 %v792
        %852 = vmatprep.subr.mxu0 %v797
        %853 = vmatpush1.msra.mxu0 %v796
        %854 = vmatprep.subr.mxu0 %v801
        %855 = vmatpush1.msra.mxu0 %v800
        %856 = vmatprep.subr.mxu0 %v805
        %857 = vmatpush1.msra.mxu0 %v804
        %858 = vmatprep.subr.mxu0 %v809
        %859 = vmatpush1.msra.mxu0 %v808
        %860 = vmatprep.subr.mxu0 %v813
        %861 = vmatpush1.msra.mxu0 %v812
        %862 = vmatprep.subr.mxu0 %v817
        %863 = vmatpush1.msra.mxu0 %v816
        %864 = vmatprep.subr.mxu0 %v821
        %865 = vmatpush1.msra.mxu0 %v820
        %866 = vmatprep.subr.mxu0 %v825
        %867 = vmatpush1.msra.mxu0 %v824
        %868 = vmatprep.subr.mxu0 %v829
        %869 = vmatpush1.msra.mxu0 %v828
        %870 = vmatprep.subr.mxu0 %v833
        %871 = vmatpush1.msra.mxu0 %v832
        %872 = vmatprep.subr.mxu0 %v837
        %873 = vmatpush1.msra.mxu0 %v836
        %874 = vmatprep.subr.mxu0 %v841
        %875 = vmatpush1.msra.mxu0 %v840
        %876 = vmatprep.subr.mxu0 0.0
        %877 = vmatpush1.msra.mxu0 0.0
        %878 = vmatprep.subr.mxu0 0.0
        %879 = vmatpush1.msra.mxu0 0.0
        %880 = vmatprep.subr.mxu0 0.0
        %881 = vmatpush1.msra.mxu0 0.0
        %882 = vmatprep.subr.mxu0 0.0
        %883 = vmatpush1.msra.mxu0 0.0
        %884 = vmatprep.subr.mxu0 0.0
        %885 = vmatpush1.msra.mxu0 0.0
        %886 = vmatprep.subr.mxu0 0.0
        %887 = vmatpush1.msra.mxu0 0.0
        %888 = vmatprep.subr.mxu0 0.0
        %889 = vmatpush1.msra.mxu0 0.0
        %890 = vmatprep.subr.mxu0 0.0
        %891 = vmatpush1.msra.mxu0 0.0
        %892 = vmatprep.subr.mxu0 0.0
        %893 = vmatpush1.msra.mxu0 0.0
        %894 = vmatprep.subr.mxu0 0.0
        %895 = vmatpush1.msra.mxu0 0.0
        %896 = vmatprep.subr.mxu0 0.0
        %897 = vmatpush1.msra.mxu0 0.0
        %898 = vmatprep.subr.mxu0 0.0
        %899 = vmatpush1.msra.mxu0 0.0
        %900 = vmatprep.subr.mxu0 0.0
        %901 = vmatpush1.msra.mxu0 0.0
        %902 = vmatprep.subr.mxu0 0.0
        %903 = vmatpush1.msra.mxu0 0.0
        %904 = vmatprep.subr.mxu0 0.0
        %905 = vmatpush1.msra.mxu0 0.0
        %906 = vmatprep.subr.mxu0 0.0
        %907 = vmatpush1.msra.mxu0 0.0
        %908 = vmatprep.mubr.f32.mxu0 0.0
        %909 = vmatmul.mubr.f32.gmra.mrb[0].mxu0 %v711
        %v910 = vpop.f32.mrb[0].mxu0
        %v911 = vadd.f32 0.0, %v910
        %v912 = vpop.f32.mrb[0].mxu0
        %v913 = vadd.f32 0.0, %v912
        %914 = vdwg.mxu0
        %915 = vmatprep.subr.mxu0 %v783
        %916 = vmatpush1.msra.mxu0 %v782
        %917 = vmatprep.subr.mxu0 %v787
        %918 = vmatpush1.msra.mxu0 %v786
        %919 = vmatprep.subr.mxu0 %v791
        %920 = vmatpush1.msra.mxu0 %v790
        %921 = vmatprep.subr.mxu0 %v795
        %922 = vmatpush1.msra.mxu0 %v794
        %923 = vmatprep.subr.mxu0 %v799
        %924 = vmatpush1.msra.mxu0 %v798
        %925 = vmatprep.subr.mxu0 %v803
        %926 = vmatpush1.msra.mxu0 %v802
        %927 = vmatprep.subr.mxu0 %v807
        %928 = vmatpush1.msra.mxu0 %v806
        %929 = vmatprep.subr.mxu0 %v811
        %930 = vmatpush1.msra.mxu0 %v810
        %931 = vmatprep.subr.mxu0 %v815
        %932 = vmatpush1.msra.mxu0 %v814
        %933 = vmatprep.subr.mxu0 %v819
        %934 = vmatpush1.msra.mxu0 %v818
        %935 = vmatprep.subr.mxu0 %v823
        %936 = vmatpush1.msra.mxu0 %v822
        %937 = vmatprep.subr.mxu0 %v827
        %938 = vmatpush1.msra.mxu0 %v826
        %939 = vmatprep.subr.mxu0 %v831
        %940 = vmatpush1.msra.mxu0 %v830
        %941 = vmatprep.subr.mxu0 %v835
        %942 = vmatpush1.msra.mxu0 %v834
        %943 = vmatprep.subr.mxu0 %v839
        %944 = vmatpush1.msra.mxu0 %v838
        %945 = vmatprep.subr.mxu0 %v843
        %946 = vmatpush1.msra.mxu0 %v842
        %947 = vmatprep.subr.mxu0 0.0
        %948 = vmatpush1.msra.mxu0 0.0
        %949 = vmatprep.subr.mxu0 0.0
        %950 = vmatpush1.msra.mxu0 0.0
        %951 = vmatprep.subr.mxu0 0.0
        %952 = vmatpush1.msra.mxu0 0.0
        %953 = vmatprep.subr.mxu0 0.0
        %954 = vmatpush1.msra.mxu0 0.0
        %955 = vmatprep.subr.mxu0 0.0
        %956 = vmatpush1.msra.mxu0 0.0
        %957 = vmatprep.subr.mxu0 0.0
        %958 = vmatpush1.msra.mxu0 0.0
        %959 = vmatprep.subr.mxu0 0.0
        %960 = vmatpush1.msra.mxu0 0.0
        %961 = vmatprep.subr.mxu0 0.0
        %962 = vmatpush1.msra.mxu0 0.0
        %963 = vmatprep.subr.mxu0 0.0
        %964 = vmatpush1.msra.mxu0 0.0
        %965 = vmatprep.subr.mxu0 0.0
        %966 = vmatpush1.msra.mxu0 0.0
        %967 = vmatprep.subr.mxu0 0.0
        %968 = vmatpush1.msra.mxu0 0.0
        %969 = vmatprep.subr.mxu0 0.0
        %970 = vmatpush1.msra.mxu0 0.0
        %971 = vmatprep.subr.mxu0 0.0
        %972 = vmatpush1.msra.mxu0 0.0
        %973 = vmatprep.subr.mxu0 0.0
        %974 = vmatpush1.msra.mxu0 0.0
        %975 = vmatprep.subr.mxu0 0.0
        %976 = vmatpush1.msra.mxu0 0.0
        %977 = vmatprep.subr.mxu0 0.0
        %978 = vmatpush1.msra.mxu0 0.0
        %979 = vmatprep.mubr.f32.mxu0 0.0
        %980 = vmatmul.mubr.f32.gmra.mrb[0].mxu0 %v711
        %v981 = vpop.f32.mrb[0].mxu0
        %v982 = vadd.f32 0.0, %v981
        %v983 = vpop.f32.mrb[0].mxu0
        %v984 = vadd.f32 0.0, %v983
        %985 = vdwg.mxu0
        %986 = vmatprep.subr.mxu0 %v716
        %987 = vmatpush1.msra.mxu0 %v715
        %988 = vmatprep.subr.mxu0 %v720
        %989 = vmatpush1.msra.mxu0 %v719
        %990 = vmatprep.subr.mxu0 %v724
        %991 = vmatpush1.msra.mxu0 %v723
        %992 = vmatprep.subr.mxu0 %v728
        %993 = vmatpush1.msra.mxu0 %v727
        %994 = vmatprep.subr.mxu0 %v732
        %995 = vmatpush1.msra.mxu0 %v731
        %996 = vmatprep.subr.mxu0 %v736
        %997 = vmatpush1.msra.mxu0 %v735
        %998 = vmatprep.subr.mxu0 %v740
        %999 = vmatpush1.msra.mxu0 %v739
        %1000 = vmatprep.subr.mxu0 %v744
        %1001 = vmatpush1.msra.mxu0 %v743
        %1002 = vmatprep.subr.mxu0 %v748
        %1003 = vmatpush1.msra.mxu0 %v747
        %1004 = vmatprep.subr.mxu0 %v752
        %1005 = vmatpush1.msra.mxu0 %v751
        %1006 = vmatprep.subr.mxu0 %v756
        %1007 = vmatpush1.msra.mxu0 %v755
        %1008 = vmatprep.subr.mxu0 %v760
        %1009 = vmatpush1.msra.mxu0 %v759
        %1010 = vmatprep.subr.mxu0 %v764
        %1011 = vmatpush1.msra.mxu0 %v763
        %1012 = vmatprep.subr.mxu0 %v768
        %1013 = vmatpush1.msra.mxu0 %v767
        %1014 = vmatprep.subr.mxu0 %v772
        %1015 = vmatpush1.msra.mxu0 %v771
        %1016 = vmatprep.subr.mxu0 %v776
        %1017 = vmatpush1.msra.mxu0 %v775
        %1018 = vmatprep.subr.mxu0 0.0
        %1019 = vmatpush1.msra.mxu0 0.0
        %1020 = vmatprep.subr.mxu0 0.0
        %1021 = vmatpush1.msra.mxu0 0.0
        %1022 = vmatprep.subr.mxu0 0.0
        %1023 = vmatpush1.msra.mxu0 0.0
        %1024 = vmatprep.subr.mxu0 0.0
        %1025 = vmatpush1.msra.mxu0 0.0
        %1026 = vmatprep.subr.mxu0 0.0
        %1027 = vmatpush1.msra.mxu0 0.0
        %1028 = vmatprep.subr.mxu0 0.0
        %1029 = vmatpush1.msra.mxu0 0.0
        %1030 = vmatprep.subr.mxu0 0.0
        %1031 = vmatpush1.msra.mxu0 0.0
        %1032 = vmatprep.subr.mxu0 0.0
        %1033 = vmatpush1.msra.mxu0 0.0
        %1034 = vmatprep.subr.mxu0 0.0
        %1035 = vmatpush1.msra.mxu0 0.0
        %1036 = vmatprep.subr.mxu0 0.0
        %1037 = vmatpush1.msra.mxu0 0.0
        %1038 = vmatprep.subr.mxu0 0.0
        %1039 = vmatpush1.msra.mxu0 0.0
        %1040 = vmatprep.subr.mxu0 0.0
        %1041 = vmatpush1.msra.mxu0 0.0
        %1042 = vmatprep.subr.mxu0 0.0
        %1043 = vmatpush1.msra.mxu0 0.0
        %1044 = vmatprep.subr.mxu0 0.0
        %1045 = vmatpush1.msra.mxu0 0.0
        %1046 = vmatprep.subr.mxu0 0.0
        %1047 = vmatpush1.msra.mxu0 0.0
        %1048 = vmatprep.subr.mxu0 0.0
        %1049 = vmatpush1.msra.mxu0 0.0
        %1050 = vmatprep.mubr.f32.mxu0 0.0
        %1051 = vmatmul.mubr.f32.gmra.mrb[0].mxu0 %v707
        %v1052 = vpop.f32.mrb[0].mxu0
        %v1053 = vadd.f32 %v911, %v1052
        %v1054 = vpop.f32.mrb[0].mxu0
        %v1055 = vadd.f32 %v913, %v1054
        %1056 = vdwg.mxu0
        %1057 = vmatprep.subr.mxu0 %v718
        %1058 = vmatpush1.msra.mxu0 %v717
        %1059 = vmatprep.subr.mxu0 %v722
        %1060 = vmatpush1.msra.mxu0 %v721
        %1061 = vmatprep.subr.mxu0 %v726
        %1062 = vmatpush1.msra.mxu0 %v725
        %1063 = vmatprep.subr.mxu0 %v730
        %1064 = vmatpush1.msra.mxu0 %v729
        %1065 = vmatprep.subr.mxu0 %v734
        %1066 = vmatpush1.msra.mxu0 %v733
        %1067 = vmatprep.subr.mxu0 %v738
        %1068 = vmatpush1.msra.mxu0 %v737
        %1069 = vmatprep.subr.mxu0 %v742
        %1070 = vmatpush1.msra.mxu0 %v741
        %1071 = vmatprep.subr.mxu0 %v746
        %1072 = vmatpush1.msra.mxu0 %v745
        %1073 = vmatprep.subr.mxu0 %v750
        %1074 = vmatpush1.msra.mxu0 %v749
        %1075 = vmatprep.subr.mxu0 %v754
        %1076 = vmatpush1.msra.mxu0 %v753
        %1077 = vmatprep.subr.mxu0 %v758
        %1078 = vmatpush1.msra.mxu0 %v757
        %1079 = vmatprep.subr.mxu0 %v762
        %1080 = vmatpush1.msra.mxu0 %v761
        %1081 = vmatprep.subr.mxu0 %v766
        %1082 = vmatpush1.msra.mxu0 %v765
        %1083 = vmatprep.subr.mxu0 %v770
        %1084 = vmatpush1.msra.mxu0 %v769
        %1085 = vmatprep.subr.mxu0 %v774
        %1086 = vmatpush1.msra.mxu0 %v773
        %1087 = vmatprep.subr.mxu0 %v778
        %1088 = vmatpush1.msra.mxu0 %v777
        %1089 = vmatprep.subr.mxu0 0.0
        %1090 = vmatpush1.msra.mxu0 0.0
        %1091 = vmatprep.subr.mxu0 0.0
        %1092 = vmatpush1.msra.mxu0 0.0
        %1093 = vmatprep.subr.mxu0 0.0
        %1094 = vmatpush1.msra.mxu0 0.0
        %1095 = vmatprep.subr.mxu0 0.0
        %1096 = vmatpush1.msra.mxu0 0.0
        %1097 = vmatprep.subr.mxu0 0.0
        %1098 = vmatpush1.msra.mxu0 0.0
        %1099 = vmatprep.subr.mxu0 0.0
        %1100 = vmatpush1.msra.mxu0 0.0
        %1101 = vmatprep.subr.mxu0 0.0
        %1102 = vmatpush1.msra.mxu0 0.0
        %1103 = vmatprep.subr.mxu0 0.0
        %1104 = vmatpush1.msra.mxu0 0.0
        %1105 = vmatprep.subr.mxu0 0.0
        %1106 = vmatpush1.msra.mxu0 0.0
        %1107 = vmatprep.subr.mxu0 0.0
        %1108 = vmatpush1.msra.mxu0 0.0
        %1109 = vmatprep.subr.mxu0 0.0
        %1110 = vmatpush1.msra.mxu0 0.0
        %1111 = vmatprep.subr.mxu0 0.0
        %1112 = vmatpush1.msra.mxu0 0.0
        %1113 = vmatprep.subr.mxu0 0.0
        %1114 = vmatpush1.msra.mxu0 0.0
        %1115 = vmatprep.subr.mxu0 0.0
        %1116 = vmatpush1.msra.mxu0 0.0
        %1117 = vmatprep.subr.mxu0 0.0
        %1118 = vmatpush1.msra.mxu0 0.0
        %1119 = vmatprep.subr.mxu0 0.0
        %1120 = vmatpush1.msra.mxu0 0.0
        %1121 = vmatprep.mubr.f32.mxu0 0.0
        %1122 = vmatmul.mubr.f32.gmra.mrb[0].mxu0 %v707
        %v1123 = vpop.f32.mrb[0].mxu0
        %v1124 = vadd.f32 %v982, %v1123
        %v1125 = vpop.f32.mrb[0].mxu0
        %v1126 = vadd.f32 %v984, %v1125
        %1127 = vdwg.mxu0
        %s1128 = scalar_lea.vmem %s3, 4
        %v1129 = vld [vmem:[%s1128] sm:$0xf]
        %v1131 = vlaneseq
        %v1132 = vshrl.u32 %v1131, 7
        %v1133 = vsub.s32 0, %v1132
        %v1134 = vrot.slane %v1129, %v1133
        %v1135 = vlaneseq
        %v1136 = vshrl.u32 %v1135, 7
        %v1137 = vsub.s32 1, %v1136
        %v1138 = vrot.slane %v1129, %v1137
        %v1139 = vlaneseq
        %v1140 = vshrl.u32 %v1139, 7
        %v1141 = vsub.s32 2, %v1140
        %v1142 = vrot.slane %v1129, %v1141
        %v1143 = vlaneseq
        %v1144 = vshrl.u32 %v1143, 7
        %v1145 = vsub.s32 3, %v1144
        %v1146 = vrot.slane %v1129, %v1145
        %v1151 = vadd.f32 %v1053, %v1134
        %v1152 = vadd.f32 %v1055, %v1138
        %v1153 = vadd.f32 %v1124, %v1142
        %v1154 = vadd.f32 %v1126, %v1146
        %v1155 = vxor.u32 %v1151, 2147483648
        %v1156 = vmul.f32 %v1155, 1.442695
        %v1157 = vpow.pop %v1156
        %v1158 = vadd.f32 %v1157, 1.0
        %v1159 = vrcp.pop %v1158
        %v1160 = vmul.f32 1.0, %v1159
        %v1161 = vxor.u32 %v1152, 2147483648
        %v1162 = vmul.f32 %v1161, 1.442695
        %v1163 = vpow.pop %v1162
        %v1164 = vadd.f32 %v1163, 1.0
        %v1165 = vrcp.pop %v1164
        %v1166 = vmul.f32 1.0, %v1165
        %v1167 = vtanh.pop %v1153
        %v1168 = vxor.u32 %v1154, 2147483648
        %v1169 = vmul.f32 %v1168, 1.442695
        %v1170 = vpow.pop %v1169
        %v1171 = vadd.f32 %v1170, 1.0
        %v1172 = vrcp.pop %v1171
        %v1173 = vmul.f32 1.0, %v1172
        %v1174 = vmul.f32 %v1166, %v713
        %v1175 = vmul.f32 %v1160, %v1167
        %v1176 = vadd.f32 %v1174, %v1175
        %v1177 = vtanh.pop %v1176
        %v1178 = vmul.f32 %v1173, %v1177
        %1179 = vst [vmem:[%s710] sm:$0xff] %v1178
        %1180 = vst [vmem:[%s712] sm:$0xff] %v1176
        // Predicated region
        $region49: #{encoder_forward.1} parent=35 // pred_check
          %p1181 = pneg %p121
        $region50: #{encoder_forward.1} parent=35 // pred_check_branch
          %1183 = sbr.rel (%p1181) target = $region52
        $region51: #{encoder_forward.1} parent=35 // pred_region
          _
        $region52: #{encoder_forward.1} parent=35 // pred_fallthru
          _
        // Predicated region
        $region53: #{encoder_forward.1} parent=35 // pred_check
          %p1184 = pneg %p142
        $region54: #{encoder_forward.1} parent=35 // pred_check_branch
          %1186 = sbr.rel (%p1184) target = $region56
        $region55: #{encoder_forward.1} parent=35 // pred_region
          _
        $region56: #{encoder_forward.1} parent=35 // pred_fallthru
          _
        // Predicated region
        $region57: #{encoder_forward.1} parent=35 // pred_check
          %p1187 = pneg %p121
        $region58: #{encoder_forward.1} parent=35 // pred_check_branch
          %1189 = sbr.rel (%p1187) target = $region60
        $region59: #{encoder_forward.1} parent=35 // pred_region
          _
        $region60: #{encoder_forward.1} parent=35 // pred_fallthru
          _
        // Predicated region
        $region61: #{encoder_forward.1} parent=35 // pred_check
          %p1190 = pneg %p142
        $region62: #{encoder_forward.1} parent=35 // pred_check_branch
          %1192 = sbr.rel (%p1190) target = $region64
        $region63: #{encoder_forward.1} parent=35 // pred_region
          _
        $region64: #{encoder_forward.1} parent=35 // pred_fallthru
          _
      $region36: #{encoder_forward.1} parent=5 // pred_fallthru
        _
      %p1193 = scmp.le.s32.totalorder 2, %s14
      // Predicated region
      $region65: #{encoder_forward.1} parent=5 // pred_check
        %p1194 = pneg %p1193
      $region66: #{encoder_forward.1} parent=5 // pred_check_branch
        %1196 = sbr.rel (%p1194) target = $region68
      $region67: #{encoder_forward.1} parent=5 // pred_region
        %s1197 = ssub.s32 %s14, 2
      $region68: #{encoder_forward.1} parent=5 // pred_fallthru
        _
    $region6: #{encoder_forward.1} parent=1 // loop_footer
      %s18 = sadd.s32 1, %s14
    $region7: #{encoder_forward.1} parent=1 // loop_footer_branch
      %13 = sbr.rel target = $region3
    $region8: #{encoder_forward.1} parent=1 // loop_exit
      _
    %1198 = vsyncpa [#allocation3], 1
    %s1199 = scalar_lea.sflag [#allocation3], 1
    %1200 = vsyncpa %s1199, 1
    %1201 = vsyncpa [#allocation5], 1

</llo_original>
